<compile_context>
chip_gen: v7x
topology: tpu7x:2x2x1
jax: 0.10.0
libtpu: 0.0.40
codegen_flags: <defaults>
</compile_context>

<pallas_src>
from functools import partial

import jax
import jax.numpy as jnp
from jax.experimental import pallas as pl
from jax.experimental.pallas import tpu as pltpu


# ------------------------------ Pallas kernels ------------------------------

def _unetup1_deconv_kernel(x_ref, awt_ref, bhc_ref, o_ref, t_ref):
    """Fused ConvTranspose2d(k=2, s=2) + bilinear resize for Nb batch elements.

    x_ref   : (Nb, Cin*H, W)      batch block, rows = (ci, h)
    awt_ref : (2, W, Wo_pad)      width operators Aw(dj)^T (lane-padded with zeros)
    bhc_ref : (P, Kc)             P = Cout*Ho, Kc = 2*Cin*H + 8.  Columns
                                  [dj*Cin*H : (dj+1)*Cin*H] hold the H-resize +
                                  channel-mix operator for parity dj; column
                                  2*Cin*H holds the bias; remaining columns zero.
    o_ref   : (Nb, P, Wo_pad)
    t_ref   : VMEM scratch (Nb, Kc, Wo_pad)
    """
    nb, kh, w = x_ref.shape
    d = awt_ref.shape[0]
    wo = o_ref.shape[-1]

    x2 = x_ref[...].reshape(nb * kh, w)

    # Right (width) matmuls, staged into the K-merged scratch.
    for j in range(d):                                           # d == 2, static
        tj = jnp.dot(x2, awt_ref[j], preferred_element_type=jnp.float32)
        t_ref[:, j * kh:(j + 1) * kh, :] = tj.reshape(nb, kh, wo)

    # Bias rows: row d*kh is all ones (picks up the bias column of bhc), the
    # remaining pad rows are zero.  Written every step (megacore-safe, trivial).
    pad = t_ref.shape[1] - d * kh
    sub = jax.lax.broadcasted_iota(jnp.int32, (nb, pad, wo), 1)
    t_ref[:, d * kh:d * kh + pad, :] = jnp.where(sub == 0, 1.0, 0.0)

    # One K = Kc left matmul per batch element (full MXU depth); result written
    # straight to the output block -> no accumulator held live across an unroll.
    bhc = bhc_ref[...]
    for n in range(nb):                                          # static unroll
        o_ref[n] = jnp.dot(bhc, t_ref[n],
                           preferred_element_type=jnp.float32).astype(o_ref.dtype)


def _unetup1_bilinear_kernel(x_ref, awt_ref, ah_ref, o_ref):
    """UpsamplingBilinear2d(x2) + bilinear resize (no channel mixing).

    x_ref  : (Nb, C*H, W)
    awt_ref: (W, Wo_pad)   combined width operator (Rw @ Uw)^T, lane-padded
    ah_ref : (Ho, H)       combined height operator Rh @ Uh
    o_ref  : (Nb, C, Ho, Wo_pad)
    """
    nb, ch, w = x_ref.shape
    ho, h = ah_ref.shape
    c = ch // h
    wo = o_ref.shape[-1]

    t = jnp.dot(x_ref[...].reshape(nb * ch, w), awt_ref[...],
                preferred_element_type=jnp.float32)              # (nb*ch, wo)
    t3 = t.reshape(nb * c, h, wo)
    # Per-channel H-resize as a batched matmul: no dense kron(eye(C), A_h).
    ah_b = jnp.broadcast_to(ah_ref[...], (nb * c, ho, h))
    y = jnp.einsum('boh,bhw->bow', ah_b, t3,
                   preferred_element_type=jnp.float32)           # (nb*c, ho, wo)
    o_ref[...] = y.reshape(nb, c, ho, wo).astype(o_ref.dtype)


# ------------------------------ pallas_call wrappers ------------------------

@partial(jax.jit, static_argnames=("nb",))
def _deconv_call(x_flat, awt, bhc, *, nb):
    n_pad, kh, w = x_flat.shape
    d, _, wo_pad = awt.shape
    p, kc = bhc.shape
    n_steps = n_pad // nb
    return pl.pallas_call(
        _unetup1_deconv_kernel,
        out_shape=jax.ShapeDtypeStruct((n_pad, p, wo_pad), jnp.float32),
        grid=(n_steps,),
        in_specs=[
            pl.BlockSpec((nb, kh, w), lambda i: (i, 0, 0)),
            # Constant-index operator streams.
            # TODO(synk): for production channel counts, single-buffer these
            # (pipeline_mode=pl.Buffered(1)) and tile bhc over P rows via a
            # second grid axis + vmem_limit_bytes; unnecessary at these sizes.
            pl.BlockSpec((d, w, wo_pad), lambda i: (0, 0, 0)),
            pl.BlockSpec((p, kc), lambda i: (0, 0)),
        ],
        out_specs=pl.BlockSpec((nb, p, wo_pad), lambda i: (i, 0, 0)),
        scratch_shapes=[pltpu.VMEM((nb, kc, wo_pad), jnp.float32)],
        compiler_params=pltpu.CompilerParams(dimension_semantics=("parallel",)),
    )(x_flat, awt, bhc)


@partial(jax.jit, static_argnames=("nb",))
def _bilinear_call(x_flat, awt, ah, *, nb):
    n_pad, ch, w = x_flat.shape
    wo_pad = awt.shape[-1]
    ho, h = ah.shape
    c = ch // h
    n_steps = n_pad // nb
    return pl.pallas_call(
        _unetup1_bilinear_kernel,
        out_shape=jax.ShapeDtypeStruct((n_pad, c, ho, wo_pad), jnp.float32),
        grid=(n_steps,),
        in_specs=[
            pl.BlockSpec((nb, ch, w), lambda i: (i, 0, 0)),
            pl.BlockSpec((w, wo_pad), lambda i: (0, 0)),
            pl.BlockSpec((ho, h), lambda i: (0, 0)),
        ],
        out_specs=pl.BlockSpec((nb, c, ho, wo_pad), lambda i: (i, 0, 0, 0)),
        compiler_params=pltpu.CompilerParams(dimension_semantics=("parallel",)),
    )(x_flat, awt, ah)


# -------------------------- operator precomputation -------------------------

def _round_up(x, m):
    return ((x + m - 1) // m) * m


def _bilinear_matrix(in_size, out_size):
    """PyTorch F.interpolate(mode='bilinear', align_corners=False) as (out, in)."""
    scale = in_size / out_size
    i = jnp.arange(out_size, dtype=jnp.float32)
    src = jnp.maximum(scale * (i + 0.5) - 0.5, 0.0)
    i0 = jnp.clip(jnp.floor(src).astype(jnp.int32), 0, in_size - 1)
    i1 = jnp.minimum(i0 + 1, in_size - 1)
    lam = src - i0.astype(jnp.float32)
    idx = jnp.arange(out_size)
    R = jnp.zeros((out_size, in_size), jnp.float32)
    R = R.at[idx, i0].add(1.0 - lam)
    R = R.at[idx, i1].add(lam)
    return R


def _bilinear_matrix_ac1(in_size, out_size):
    """nn.UpsamplingBilinear2d (align_corners=True) as (out, in)."""
    if in_size == 1:
        return jnp.ones((out_size, 1), jnp.float32)
    scale = (in_size - 1) / (out_size - 1)
    i = jnp.arange(out_size, dtype=jnp.float32)
    src = i * scale
    i0 = jnp.clip(jnp.floor(src).astype(jnp.int32), 0, in_size - 1)
    i1 = jnp.minimum(i0 + 1, in_size - 1)
    lam = src - i0.astype(jnp.float32)
    idx = jnp.arange(out_size)
    R = jnp.zeros((out_size, in_size), jnp.float32)
    R = R.at[idx, i0].add(1.0 - lam)
    R = R.at[idx, i1].add(lam)
    return R


def precompute_unetup1(in_hw, output_lim, *, is_deconv=True,
                       weight=None, bias=None, num_channels=None):
    """Build the fused operator matrices ONCE per parameter set.

    weight: (in_size, out_size, 2, 2) ConvTranspose2d weight (is_deconv=True).
    bias  : (out_size,) ConvTranspose2d bias.
    """
    H, W = in_hw
    Ho, Wo = (output_lim if isinstance(output_lim, (tuple, list))
              else (output_lim, output_lim))
    Wo_pad = _round_up(max(Wo, 128), 128)       # lane-dense output width
    Rh = _bilinear_matrix(2 * H, Ho)            # (Ho, 2H)  align_corners=False
    Rw = _bilinear_matrix(2 * W, Wo)            # (Wo, 2W)

    if is_deconv:
        Cin, Cout = weight.shape[0], weight.shape[1]
        KH, P = Cin * H, Cout * Ho
        Ah = jnp.stack([Rh[:, 0::2], Rh[:, 1::2]])             # (2, Ho, H): Rh[:, 2h+di]
        Aw = jnp.stack([Rw[:, 0::2], Rw[:, 1::2]])             # (2, Wo, W)
        awt = jnp.transpose(Aw, (0, 2, 1))                     # (2, W, Wo)
        awt = jnp.pad(awt, ((0, 0), (0, 0), (0, Wo_pad - Wo))) # zero lane padding
        # bh[dj][(co,ho),(ci,h)] = sum_di weight[ci,co,di,dj] * Ah[di,ho,h]
        bh = jnp.einsum('icdj,doh->jcoih', weight, Ah).reshape(2, P, KH)
        bcol = jnp.repeat(bias, Ho)[:, None].astype(jnp.float32)     # (P, 1)
        # K-merged left operator with the bias folded in (K = 2*KH + 8).
        bhc = jnp.concatenate(
            [bh[0], bh[1], bcol, jnp.zeros((P, 7), jnp.float32)], axis=1)
        return dict(is_deconv=True, awt=awt, bhc=bhc,
                    out_channels=Cout, out_hw=(Ho, Wo), wo_pad=Wo_pad)
    else:
        C = num_channels
        Uh = _bilinear_matrix_ac1(H, 2 * H)                    # (2H, H)
        Uw = _bilinear_matrix_ac1(W, 2 * W)                    # (2W, W)
        A_h = Rh @ Uh                                          # (Ho, H)
        A_w = Rw @ Uw                                          # (Wo, W)
        awt = jnp.pad(A_w.T, ((0, 0), (0, Wo_pad - Wo)))       # (W, Wo_pad)
        return dict(is_deconv=False, awt=awt, ah=A_h,
                    out_channels=C, out_hw=(Ho, Wo), wo_pad=Wo_pad)


def unetup1_forward(x, ops):
    """x: (N, C, H, W) float32 -> (N, out_channels, Ho, Wo)."""
    N, C, H, W = x.shape
    Ho, Wo = ops["out_hw"]
    x_flat = x.reshape(N, C * H, W)                            # contiguous, free

    # Batch blocking: Nb elements per grid step; exactly 2 "parallel" steps when
    # N >= 2 (v7x has 2 TensorCores).  TODO(synk): cap Nb / split P rows for very
    # large N or when N == 1 at production sizes.
    nb = (N + 1) // 2 if N > 1 else 1
    n_steps = -(-N // nb)
    n_pad = nb * n_steps
    if n_pad != N:
        x_flat = jnp.pad(x_flat, ((0, n_pad - N), (0, 0), (0, 0)))

    if ops["is_deconv"]:
        out = _deconv_call(x_flat, ops["awt"], ops["bhc"], nb=nb)     # (n_pad, P, Wo_pad)
        out = out[:N, :, :Wo]
        return out.reshape(N, ops["out_channels"], Ho, Wo)
    else:
        out = _bilinear_call(x_flat, ops["awt"], ops["ah"], nb=nb)    # (n_pad, C, Ho, Wo_pad)
        return out[:N, :, :, :Wo]


# ---------------------------- pure-JAX reference ----------------------------
# TODO(synk): this validates the fusion algebra; validate the bilinear matrices
# against actual torch.nn.functional.interpolate outputs offline.

def _ref_forward(x, output_lim, *, is_deconv=True, weight=None, bias=None):
    N, C, H, W = x.shape
    Ho, Wo = (output_lim if isinstance(output_lim, (tuple, list))
              else (output_lim, output_lim))
    if is_deconv:
        Cout = weight.shape[1]
        # ConvTranspose2d k=2 s=2: u[n,co,2i+k,2j+l] = sum_c x[n,c,i,j] W[c,co,k,l]
        u = jnp.einsum('ncij,cokl->noikjl', x, weight).reshape(N, Cout, 2 * H, 2 * W)
        u = u + bias[None, :, None, None]
    else:
        Uh = _bilinear_matrix_ac1(H, 2 * H)
        Uw = _bilinear_matrix_ac1(W, 2 * W)
        u = jnp.einsum('oh,nchw,pw->ncop', Uh, x, Uw)
    Rh = _bilinear_matrix(2 * H, Ho)
    Rw = _bilinear_matrix(2 * W, Wo)
    return jnp.einsum('oh,nchw,pw->ncop', Rh, u, Rw)


# ---------------------------------- main ------------------------------------

if __name__ == "__main__":
    key = jax.random.PRNGKey(0)
    kx, kw, kb = jax.random.split(key, 3)

    N, in_size, out_size = 2, 8, 4
    H = W = 16
    output_lim = (70, 70)

    x = jax.random.normal(kx, (N, in_size, H, W), jnp.float32)
    w = jax.random.normal(kw, (in_size, out_size, 2, 2), jnp.float32) / jnp.sqrt(4.0 * in_size)
    b = jax.random.normal(kb, (out_size,), jnp.float32) * 0.1

    # ---- is_deconv=True (ConvTranspose2d then bilinear interpolate) ----
    ops = precompute_unetup1((H, W), output_lim, is_deconv=True, weight=w, bias=b)
    out = jax.block_until_ready(unetup1_forward(x, ops))
    assert out.shape == (N, out_size, 70, 70), out.shape
    ref = _ref_forward(x, output_lim, is_deconv=True, weight=w, bias=b)
    err = float(jnp.max(jnp.abs(out - ref)))
    assert jnp.allclose(out, ref, atol=1e-3, rtol=1e-3), err

    # ---- is_deconv=False (UpsamplingBilinear2d(x2) then bilinear interpolate) ----
    ops_b = precompute_unetup1((H, W), output_lim, is_deconv=False, num_channels=in_size)
    out_b = jax.block_until_ready(unetup1_forward(x, ops_b))
    assert out_b.shape == (N, in_size, 70, 70), out_b.shape
    ref_b = _ref_forward(x, output_lim, is_deconv=False)
    err_b = float(jnp.max(jnp.abs(out_b - ref_b)))
    assert jnp.allclose(out_b, ref_b, atol=1e-3, rtol=1e-3), err_b

    print("KERNEL_OK")
</pallas_src>

<mosaic_0001>
module attributes {stable_mosaic.version = 11 : i64} {
  func.func @_unetup1_deconv_kernel(%arg0: i32, %arg1: memref<1x128x16xf32, #tpu.memory_space<vmem>>, %arg2: memref<2x16x128xf32, #tpu.memory_space<vmem>>, %arg3: memref<280x264xf32, #tpu.memory_space<vmem>>, %arg4: memref<1x280x128xf32, #tpu.memory_space<vmem>>, %arg5: memref<1x264x128xf32, #tpu.memory_space<vmem>>) attributes {dimension_semantics = [#tpu.dimension_semantics<parallel>], iteration_bounds = array<i64: 2>, scalar_prefetch = 0 : i64, scratch_operands = 1 : i64, tpu.core_type = #tpu.core_type<tc>, window_params = [{transform_indices = @transform_0, window_bounds = array<i64: 1, 128, 16>}, {pipeline_mode = #tpu.pipeline_mode<synchronous>, transform_indices = @transform_1, window_bounds = array<i64: 2, 16, 128>}, {pipeline_mode = #tpu.pipeline_mode<synchronous>, transform_indices = @transform_2, window_bounds = array<i64: 280, 264>}, {transform_indices = @transform_3, window_bounds = array<i64: 1, 280, 128>}]} {
    %c0 = arith.constant 0 : index
    %c0_0 = arith.constant 0 : index
    %c0_1 = arith.constant 0 : index
    %0 = vector.load %arg1[%c0, %c0_0, %c0_1] : memref<1x128x16xf32, #tpu.memory_space<vmem>>, vector<1x128x16xf32>
    %1 = vector.shape_cast %0 : vector<1x128x16xf32> to vector<128x16xf32>
    %c0_2 = arith.constant 0 : index
    %c0_3 = arith.constant 0 : index
    %c0_4 = arith.constant 0 : index
    %2 = vector.load %arg2[%c0_2, %c0_3, %c0_4] : memref<2x16x128xf32, #tpu.memory_space<vmem>>, vector<1x16x128xf32>
    %3 = vector.shape_cast %2 : vector<1x16x128xf32> to vector<16x128xf32>
    %cst = arith.constant dense<0.000000e+00> : vector<128x128xf32>
    %4 = tpu.matmul %1, %3, %cst {dimension_numbers = #tpu.dot_dimension_numbers<[1], [0], [0], [1], [0, 0, 1, 1], [], []>} : vector<128x16xf32>, vector<16x128xf32>, vector<128x128xf32> -> vector<128x128xf32>
    %5 = vector.shape_cast %4 : vector<128x128xf32> to vector<1x128x128xf32>
    %c0_5 = arith.constant 0 : index
    %c0_6 = arith.constant 0 : index
    %c0_7 = arith.constant 0 : index
    %6 = vector.load %arg5[%c0_5, %c0_6, %c0_7] : memref<1x264x128xf32, #tpu.memory_space<vmem>>, vector<1x128x128xf32>
    tpu.vector_store %arg5[%c0_5, %c0_6, %c0_7], %5 {strides = array<i32>} : memref<1x264x128xf32, #tpu.memory_space<vmem>>, vector<1x128x128xf32>,
    %c1 = arith.constant 1 : index
    %c0_8 = arith.constant 0 : index
    %c0_9 = arith.constant 0 : index
    %7 = vector.load %arg2[%c1, %c0_8, %c0_9] : memref<2x16x128xf32, #tpu.memory_space<vmem>>, vector<1x16x128xf32>
    %8 = vector.shape_cast %7 : vector<1x16x128xf32> to vector<16x128xf32>
    %cst_10 = arith.constant dense<0.000000e+00> : vector<128x128xf32>
    %9 = tpu.matmul %1, %8, %cst_10 {dimension_numbers = #tpu.dot_dimension_numbers<[1], [0], [0], [1], [0, 0, 1, 1], [], []>} : vector<128x16xf32>, vector<16x128xf32>, vector<128x128xf32> -> vector<128x128xf32>
    %10 = vector.shape_cast %9 : vector<128x128xf32> to vector<1x128x128xf32>
    %c0_11 = arith.constant 0 : index
    %c128 = arith.constant 128 : index
    %c0_12 = arith.constant 0 : index
    %11 = vector.load %arg5[%c0_11, %c128, %c0_12] : memref<1x264x128xf32, #tpu.memory_space<vmem>>, vector<1x128x128xf32>
    tpu.vector_store %arg5[%c0_11, %c128, %c0_12], %10 {strides = array<i32>} : memref<1x264x128xf32, #tpu.memory_space<vmem>>, vector<1x128x128xf32>,
    %12 = tpu.iota {dimensions = array<i32: 1>} : vector<1x8x128xi32>
    %c0_i32 = arith.constant 0 : i32
    %13 = vector.broadcast %c0_i32 : i32 to vector<1x8x128xi32>
    %14 = arith.cmpi eq, %12, %13 : vector<1x8x128xi32>
    %cst_13 = arith.constant 1.000000e+00 : f32
    %cst_14 = arith.constant 0.000000e+00 : f32
    %15 = vector.broadcast %cst_13 : f32 to vector<1x8x128xf32>
    %16 = vector.broadcast %cst_14 : f32 to vector<1x8x128xf32>
    %17 = arith.select %14, %15, %16 : vector<1x8x128xi1>, vector<1x8x128xf32>
    %c0_15 = arith.constant 0 : index
    %c256 = arith.constant 256 : index
    %c0_16 = arith.constant 0 : index
    %18 = vector.load %arg5[%c0_15, %c256, %c0_16] : memref<1x264x128xf32, #tpu.memory_space<vmem>>, vector<1x8x128xf32>
    tpu.vector_store %arg5[%c0_15, %c256, %c0_16], %17 {strides = array<i32>} : memref<1x264x128xf32, #tpu.memory_space<vmem>>, vector<1x8x128xf32>,
    %c0_17 = arith.constant 0 : index
    %c0_18 = arith.constant 0 : index
    %19 = vector.load %arg3[%c0_17, %c0_18] : memref<280x264xf32, #tpu.memory_space<vmem>>, vector<280x264xf32>
    %c0_19 = arith.constant 0 : index
    %c0_20 = arith.constant 0 : index
    %c0_21 = arith.constant 0 : index
    %20 = vector.load %arg5[%c0_19, %c0_20, %c0_21] : memref<1x264x128xf32, #tpu.memory_space<vmem>>, vector<1x264x128xf32>
    %21 = vector.shape_cast %20 : vector<1x264x128xf32> to vector<264x128xf32>
    %cst_22 = arith.constant dense<0.000000e+00> : vector<280x128xf32>
    %22 = tpu.matmul %19, %21, %cst_22 {dimension_numbers = #tpu.dot_dimension_numbers<[1], [0], [0], [1], [0, 0, 1, 1], [], []>} : vector<280x264xf32>, vector<264x128xf32>, vector<280x128xf32> -> vector<280x128xf32>
    %c0_23 = arith.constant 0 : index
    %c0_24 = arith.constant 0 : index
    %c0_25 = arith.constant 0 : index
    %23 = vector.load %arg4[%c0_23, %c0_24, %c0_25] : memref<1x280x128xf32, #tpu.memory_space<vmem>>, vector<1x280x128xf32>
    %24 = vector.shape_cast %23 : vector<1x280x128xf32> to vector<280x128xf32>
    %25 = vector.shape_cast %22 : vector<280x128xf32> to vector<1x280x128xf32>
    tpu.vector_store %arg4[%c0_23, %c0_24, %c0_25], %25 {strides = array<i32>} : memref<1x280x128xf32, #tpu.memory_space<vmem>>, vector<1x280x128xf32>,
    return
  }
  func.func @transform_0(%arg0: i32) -> (i32, i32, i32) {
    %c0_i32 = arith.constant 0 : i32
    %c0_i32_0 = arith.constant 0 : i32
    %c0_i32_1 = arith.constant 0 : i32
    return %arg0, %c0_i32, %c0_i32_0 : i32, i32, i32
  }
  func.func @transform_1(%arg0: i32) -> (i32, i32, i32) {
    %c0_i32 = arith.constant 0 : i32
    %c0_i32_0 = arith.constant 0 : i32
    %c0_i32_1 = arith.constant 0 : i32
    %c0_i32_2 = arith.constant 0 : i32
    return %c0_i32, %c0_i32_0, %c0_i32_1 : i32, i32, i32
  }
  func.func @transform_2(%arg0: i32) -> (i32, i32) {
    %c0_i32 = arith.constant 0 : i32
    %c0_i32_0 = arith.constant 0 : i32
    %c0_i32_1 = arith.constant 0 : i32
    return %c0_i32, %c0_i32_0 : i32, i32
  }
  func.func @transform_3(%arg0: i32) -> (i32, i32, i32) {
    %c0_i32 = arith.constant 0 : i32
    %c0_i32_0 = arith.constant 0 : i32
    %c0_i32_1 = arith.constant 0 : i32
    return %arg0, %c0_i32, %c0_i32_0 : i32, i32, i32
  }
}

</mosaic_0001>

<llo_original>
// kernel: _deconv_call.1
$region0: #{_deconv_call.1}
  #allocation0 [shape = 'u32[]', space=smem, size = 0x4, offset = 0x4, fixed_abs, tag = 'smem constant byte address 0x4 - core index']
  #allocation1 [shape = 'u32[144,128]{1,0:T(1,128)}', space=vmem, size = 0x12000, scoped, tag = 'internal scratch']
  #allocation2 [shape = 'f32[1,264,128]{2,1,0:T(8,128)}', space=vmem, size = 0x21000, scoped, tag = 'scratch operand']
  %s0 = inlined_call_operand.vmem [shape: f32[2,128,16], index: 0, kind: input, shape index: {}]
  %s1 = inlined_call_operand.vmem [shape: f32[2,16,128], index: 1, kind: input, shape index: {}]
  %s2 = inlined_call_operand.vmem [shape: f32[280,264], index: 2, kind: input, shape index: {}]
  %s3 = inlined_call_operand.hbm [shape: f32[2,280,128], index: 3, kind: output, shape index: {}]
  %s4 = sld [smem:[#allocation0]]
  $region45: #{_deconv_call.1} parent=0
    _
  %s6 = ssub.s32 1, %s4
  %s7 = scalar_select 0, %s6, %s4
  $region1: #{_deconv_call.1} parent=0
    #allocation3 [shape = 'u8[286720]{0}', space=vmem, size = 0x46000, scoped, tag = 'output window, operand 0']
    #allocation4 [shape = 's32[2]{0}', space=sflag, size = 0x8, scoped, tag = 'scoped memory for _deconv_call.1']
    %8 = vsyncpa [#allocation4], 0
    %s9 = scalar_lea.sflag [#allocation4], 1
    %10 = vsyncpa %s9, 0
    loop: start=0, step=1, limit=4
    $region2: #{_deconv_call.1} parent=1 // loop_pre_header
      _
    $region3: #{_deconv_call.1} parent=1 // loop_header
      %s12 = sphi 0, %s16
      %p13 = scmp.ge.s32.totalorder %s12, 4
      %s22 = sphi 0, %s24
      %s25 = sphi 0, %s22
      %s26 = sphi 0, %s25
      %s42 = sphi 0, %s26
      %s46 = sphi 0, %s46
      %s48 = sphi 0, %s46
      %s49 = sphi 0, %s48
      %s63 = sphi 0, %s49
      %s67 = sphi 0, %s67
      %s69 = sphi 0, %s67
      %s70 = sphi 0, %s69
      %s84 = sphi 0, %s70
      %s90 = sphi 0, %s92
      %s93 = sphi 0, %s90
      %s94 = sphi 0, %s93
      %s110 = sphi 0, %s94
    $region4: #{_deconv_call.1} parent=1 // loop_header_branch
      %15 = sbr.rel (%p13) target = $region8
    $region5: #{_deconv_call.1} parent=1 // loop_body
      %s17 = ssub.s32 %s12, 1
      %s18 = ssub.s32 %s12, 2
      %s19 = sadd.s32 %s12, 1
      %s20 = ssub.s32 %s12, %s19
      %p21 = scmp.eq.s32.totalorder %s20, 0
      %s23 = sadd.s32 %s22, 1
      %s24 = scalar_select %p21, %s22, %s23
      %p27 = pneg %p21
      %p28 = scmp.eq.s32.totalorder %s12, 1
      %p29 = por %p27, %p28
      %p30 = scmp.ne.s32.totalorder %s22, %s25
      %p31 = scmp.eq.s32.totalorder %s12, 0
      %p32 = por %p30, %p31
      %p33 = scmp.ne.s32.totalorder %s22, %s25
      %p34 = scmp.eq.s32.totalorder %s17, 1
      %p35 = por %p33, %p34
      %p36 = scmp.ne.s32.totalorder %s25, %s26
      %p37 = scmp.eq.s32.totalorder %s17, 0
      %p38 = por %p36, %p37
      %p39 = scmp.ne.s32.totalorder %s25, %s26
      %p40 = scmp.eq.s32.totalorder %s18, 1
      %p41 = por %p39, %p40
      %p43 = scmp.ne.s32.totalorder %s26, %s42
      %p44 = scmp.eq.s32.totalorder %s18, 0
      %p45 = por %p43, %p44
      %s47 = sadd.s32 %s46, 1
      %p50 = scmp.eq.s32.totalorder %s12, 1
      %p51 = scmp.ne.s32.totalorder %s46, %s48
      %p52 = scmp.eq.s32.totalorder %s12, 0
      %p53 = por %p51, %p52
      %p54 = scmp.ne.s32.totalorder %s46, %s48
      %p55 = scmp.eq.s32.totalorder %s17, 1
      %p56 = por %p54, %p55
      %p57 = scmp.ne.s32.totalorder %s48, %s49
      %p58 = scmp.eq.s32.totalorder %s17, 0
      %p59 = por %p57, %p58
      %p60 = scmp.ne.s32.totalorder %s48, %s49
      %p61 = scmp.eq.s32.totalorder %s18, 1
      %p62 = por %p60, %p61
      %p64 = scmp.ne.s32.totalorder %s49, %s63
      %p65 = scmp.eq.s32.totalorder %s18, 0
      %p66 = por %p64, %p65
      %s68 = sadd.s32 %s67, 1
      %p71 = scmp.eq.s32.totalorder %s12, 1
      %p72 = scmp.ne.s32.totalorder %s67, %s69
      %p73 = scmp.eq.s32.totalorder %s12, 0
      %p74 = por %p72, %p73
      %p75 = scmp.ne.s32.totalorder %s67, %s69
      %p76 = scmp.eq.s32.totalorder %s17, 1
      %p77 = por %p75, %p76
      %p78 = scmp.ne.s32.totalorder %s69, %s70
      %p79 = scmp.eq.s32.totalorder %s17, 0
      %p80 = por %p78, %p79
      %p81 = scmp.ne.s32.totalorder %s69, %s70
      %p82 = scmp.eq.s32.totalorder %s18, 1
      %p83 = por %p81, %p82
      %p85 = scmp.ne.s32.totalorder %s70, %s84
      %p86 = scmp.eq.s32.totalorder %s18, 0
      %p87 = por %p85, %p86
      %s88 = ssub.s32 %s12, %s19
      %p89 = scmp.eq.s32.totalorder %s88, 0
      %s91 = sadd.s32 %s90, 1
      %s92 = scalar_select %p89, %s90, %s91
      %p95 = pneg %p89
      %p96 = scmp.eq.s32.totalorder %s12, 1
      %p97 = por %p95, %p96
      %p98 = scmp.ne.s32.totalorder %s90, %s93
      %p99 = scmp.eq.s32.totalorder %s12, 0
      %p100 = por %p98, %p99
      %p101 = scmp.ne.s32.totalorder %s90, %s93
      %p102 = scmp.eq.s32.totalorder %s17, 1
      %p103 = por %p101, %p102
      %p104 = scmp.ne.s32.totalorder %s93, %s94
      %p105 = scmp.eq.s32.totalorder %s17, 0
      %p106 = por %p104, %p105
      %p107 = scmp.ne.s32.totalorder %s93, %s94
      %p108 = scmp.eq.s32.totalorder %s18, 1
      %p109 = por %p107, %p108
      %p111 = scmp.ne.s32.totalorder %s94, %s110
      %p112 = scmp.eq.s32.totalorder %s18, 0
      %p113 = por %p111, %p112
      %p114 = scmp.le.s32.totalorder 1, %s12
      %p115 = scmp.lt.s32.totalorder %s12, 3
      %p116 = pnand %p114, %p115
      %p117 = pneg %p116
      // Predicated region
      $region9: #{_deconv_call.1} parent=5 // pred_check
        _
      $region10: #{_deconv_call.1} parent=5 // pred_check_branch
        %119 = sbr.rel (%p116) target = $region12
      $region11: #{_deconv_call.1} parent=5 // pred_region
        %s120 = ssub.s32 %s12, 1
        // Predicated region
        $region13: #{_deconv_call.1} parent=11 // pred_check
          %p121 = pneg %p59
        $region14: #{_deconv_call.1} parent=11 // pred_check_branch
          %123 = sbr.rel (%p121) target = $region16
        $region15: #{_deconv_call.1} parent=11 // pred_region
          _
        $region16: #{_deconv_call.1} parent=11 // pred_fallthru
          _
        // Predicated region
        $region17: #{_deconv_call.1} parent=11 // pred_check
          %p124 = pneg %p80
        $region18: #{_deconv_call.1} parent=11 // pred_check_branch
          %126 = sbr.rel (%p124) target = $region20
        $region19: #{_deconv_call.1} parent=11 // pred_region
          _
        $region20: #{_deconv_call.1} parent=11 // pred_fallthru
          _
      $region12: #{_deconv_call.1} parent=5 // pred_fallthru
        _
      %p127 = scmp.lt.s32.totalorder %s12, 2
      // Predicated region
      $region21: #{_deconv_call.1} parent=5 // pred_check
        %p128 = pneg %p127
      $region22: #{_deconv_call.1} parent=5 // pred_check_branch
        %130 = sbr.rel (%p128) target = $region24
      $region23: #{_deconv_call.1} parent=5 // pred_region
        // Predicated region
        $region25: #{_deconv_call.1} parent=23 // pred_check
          %p131 = pneg %p32
        $region26: #{_deconv_call.1} parent=23 // pred_check_branch
          %133 = sbr.rel (%p131) target = $region28
        $region27: #{_deconv_call.1} parent=23 // pred_region
          %p134 = scmp.lt.s32.totalorder %s12, 1
          %s135 = scalar_select %p134, %s12, 1
          %s136 = smul.addr %s135, 16
          %s137 = smul.addr %s136, 8
          %s138 = scalar_lea.vmem %s0, %s137
        $region28: #{_deconv_call.1} parent=23 // pred_fallthru
          _
      $region24: #{_deconv_call.1} parent=5 // pred_fallthru
        _
      %p139 = scmp.le.s32.totalorder 1, %s12
      %p140 = scmp.lt.s32.totalorder %s12, 3
      %p141 = pnand %p139, %p140
      %p142 = pneg %p141
      // Predicated region
      $region29: #{_deconv_call.1} parent=5 // pred_check
        _
      $region30: #{_deconv_call.1} parent=5 // pred_check_branch
        %144 = sbr.rel (%p141) target = $region32
      $region31: #{_deconv_call.1} parent=5 // pred_region
        %s145 = ssub.s32 %s12, 1
        %p146 = scmp.lt.s32.totalorder %s17, 1
        %s147 = scalar_select %p146, %s17, 1
        %s148 = smul.addr %s147, 16
        %s149 = smul.addr %s148, 8
        %s150 = scalar_lea.vmem %s0, %s149
        %p151 = pneg %p38
        %p152 = pneg %p35
        %p153 = pneg %p59
        %p154 = pneg %p56
        %p155 = pneg %p80
        %p156 = pneg %p77
        %p157 = pneg %p106
        %p158 = pneg %p103
        %s159 = sand.u32 %s93, 1
        %s160 = scalar_lea.sflag [#allocation4], %s159
        %s161 = sand.u32 %s93, 1
        %s162 = smul.addr %s161, 280
        %s163 = scalar_lea.vmem [#allocation3], %s162
        %p164 = scmp.lt.s32.totalorder %s17, 1
        %s165 = scalar_select %p164, %s17, 1
        %s166 = smul.addr %s165, 16
        %s167 = smul.addr %s166, 8
        %s168 = scalar_lea.vmem %s0, %s167
        %v169 = vld [vmem:[%s168] sm:$0xff]
        %v170 = vld [vmem:[%s168 + $0x8] sm:$0xff]
        %v171 = vld [vmem:[%s168 + $0x10] sm:$0xff]
        %v172 = vld [vmem:[%s168 + $0x18] sm:$0xff]
        %v173 = vld [vmem:[%s168 + $0x20] sm:$0xff]
        %v174 = vld [vmem:[%s168 + $0x28] sm:$0xff]
        %v175 = vld [vmem:[%s168 + $0x30] sm:$0xff]
        %v176 = vld [vmem:[%s168 + $0x38] sm:$0xff]
        %v177 = vld [vmem:[%s168 + $0x40] sm:$0xff]
        %v178 = vld [vmem:[%s168 + $0x48] sm:$0xff]
        %v179 = vld [vmem:[%s168 + $0x50] sm:$0xff]
        %v180 = vld [vmem:[%s168 + $0x58] sm:$0xff]
        %v181 = vld [vmem:[%s168 + $0x60] sm:$0xff]
        %v182 = vld [vmem:[%s168 + $0x68] sm:$0xff]
        %v183 = vld [vmem:[%s168 + $0x70] sm:$0xff]
        %v184 = vld [vmem:[%s168 + $0x78] sm:$0xff]
        %v185 = vld [vmem:[%s1] sm:$0xff]
        %v186 = vld [vmem:[%s1 + $0x8] sm:$0xff]
        %vm187 = vcmask 130048
        %v189 = vsel %vm187, %v169, 0
        %v192 = vsel %vm187, %v170, 0
        %v195 = vsel %vm187, %v171, 0
        %v198 = vsel %vm187, %v172, 0
        %v201 = vsel %vm187, %v173, 0
        %v204 = vsel %vm187, %v174, 0
        %v207 = vsel %vm187, %v175, 0
        %v210 = vsel %vm187, %v176, 0
        %v213 = vsel %vm187, %v177, 0
        %v216 = vsel %vm187, %v178, 0
        %v219 = vsel %vm187, %v179, 0
        %v222 = vsel %vm187, %v180, 0
        %v225 = vsel %vm187, %v181, 0
        %v228 = vsel %vm187, %v182, 0
        %v231 = vsel %vm187, %v183, 0
        %v234 = vsel %vm187, %v184, 0
        %236 = vmatprep.subr.mxu0 0.0
        %237 = vmatpush1.msra.mxu0 %v185
        %238 = vmatprep.subr.mxu0 0.0
        %239 = vmatpush1.msra.mxu0 %v186
        %240 = vmatprep.subr.mxu0 0.0
        %241 = vmatpush1.msra.mxu0 0.0
        %242 = vmatprep.subr.mxu0 0.0
        %243 = vmatpush1.msra.mxu0 0.0
        %244 = vmatprep.subr.mxu0 0.0
        %245 = vmatpush1.msra.mxu0 0.0
        %246 = vmatprep.subr.mxu0 0.0
        %247 = vmatpush1.msra.mxu0 0.0
        %248 = vmatprep.subr.mxu0 0.0
        %249 = vmatpush1.msra.mxu0 0.0
        %250 = vmatprep.subr.mxu0 0.0
        %251 = vmatpush1.msra.mxu0 0.0
        %252 = vmatprep.subr.mxu0 0.0
        %253 = vmatpush1.msra.mxu0 0.0
        %254 = vmatprep.subr.mxu0 0.0
        %255 = vmatpush1.msra.mxu0 0.0
        %256 = vmatprep.subr.mxu0 0.0
        %257 = vmatpush1.msra.mxu0 0.0
        %258 = vmatprep.subr.mxu0 0.0
        %259 = vmatpush1.msra.mxu0 0.0
        %260 = vmatprep.subr.mxu0 0.0
        %261 = vmatpush1.msra.mxu0 0.0
        %262 = vmatprep.subr.mxu0 0.0
        %263 = vmatpush1.msra.mxu0 0.0
        %264 = vmatprep.subr.mxu0 0.0
        %265 = vmatpush1.msra.mxu0 0.0
        %266 = vmatprep.subr.mxu0 0.0
        %267 = vmatpush1.msra.mxu0 0.0
        %268 = vmatprep.subr.mxu0 0.0
        %269 = vmatpush1.msra.mxu0 0.0
        %270 = vmatprep.subr.mxu0 0.0
        %271 = vmatpush1.msra.mxu0 0.0
        %272 = vmatprep.subr.mxu0 0.0
        %273 = vmatpush1.msra.mxu0 0.0
        %274 = vmatprep.subr.mxu0 0.0
        %275 = vmatpush1.msra.mxu0 0.0
        %276 = vmatprep.subr.mxu0 0.0
        %277 = vmatpush1.msra.mxu0 0.0
        %278 = vmatprep.subr.mxu0 0.0
        %279 = vmatpush1.msra.mxu0 0.0
        %280 = vmatprep.subr.mxu0 0.0
        %281 = vmatpush1.msra.mxu0 0.0
        %282 = vmatprep.subr.mxu0 0.0
        %283 = vmatpush1.msra.mxu0 0.0
        %284 = vmatprep.subr.mxu0 0.0
        %285 = vmatpush1.msra.mxu0 0.0
        %286 = vmatprep.subr.mxu0 0.0
        %287 = vmatpush1.msra.mxu0 0.0
        %288 = vmatprep.subr.mxu0 0.0
        %289 = vmatpush1.msra.mxu0 0.0
        %290 = vmatprep.subr.mxu0 0.0
        %291 = vmatpush1.msra.mxu0 0.0
        %292 = vmatprep.subr.mxu0 0.0
        %293 = vmatpush1.msra.mxu0 0.0
        %294 = vmatprep.subr.mxu0 0.0
        %295 = vmatpush1.msra.mxu0 0.0
        %296 = vmatprep.subr.mxu0 0.0
        %297 = vmatpush1.msra.mxu0 0.0
        %298 = vmatprep.subr.mxu0 0.0
        %299 = vmatpush1.msra.mxu0 0.0
        %300 = vmatprep.mubr.f32.mxu0 0.0
        %301 = vmatmul.mubr.f32.gmra.mrb[0].mxu0 %v189
        %v302 = vpop.f32.mrb[0].mxu0
        %v303 = vadd.f32 0.0, %v302
        %v304 = vpop.f32.mrb[0].mxu0
        %305 = vmatprep.mubr.f32.mxu0 0.0
        %306 = vmatmul.mubr.f32.gmra.mrb[0].mxu0 %v192
        %v307 = vpop.f32.mrb[0].mxu0
        %v308 = vadd.f32 0.0, %v307
        %v309 = vpop.f32.mrb[0].mxu0
        %310 = vmatprep.mubr.f32.mxu0 0.0
        %311 = vmatmul.mubr.f32.gmra.mrb[0].mxu0 %v195
        %v312 = vpop.f32.mrb[0].mxu0
        %v313 = vadd.f32 0.0, %v312
        %v314 = vpop.f32.mrb[0].mxu0
        %315 = vmatprep.mubr.f32.mxu0 0.0
        %316 = vmatmul.mubr.f32.gmra.mrb[0].mxu0 %v198
        %v317 = vpop.f32.mrb[0].mxu0
        %v318 = vadd.f32 0.0, %v317
        %v319 = vpop.f32.mrb[0].mxu0
        %320 = vmatprep.mubr.f32.mxu0 0.0
        %321 = vmatmul.mubr.f32.gmra.mrb[0].mxu0 %v201
        %v322 = vpop.f32.mrb[0].mxu0
        %v323 = vadd.f32 0.0, %v322
        %v324 = vpop.f32.mrb[0].mxu0
        %325 = vmatprep.mubr.f32.mxu0 0.0
        %326 = vmatmul.mubr.f32.gmra.mrb[0].mxu0 %v204
        %v327 = vpop.f32.mrb[0].mxu0
        %v328 = vadd.f32 0.0, %v327
        %v329 = vpop.f32.mrb[0].mxu0
        %330 = vmatprep.mubr.f32.mxu0 0.0
        %331 = vmatmul.mubr.f32.gmra.mrb[0].mxu0 %v207
        %v332 = vpop.f32.mrb[0].mxu0
        %v333 = vadd.f32 0.0, %v332
        %v334 = vpop.f32.mrb[0].mxu0
        %335 = vmatprep.mubr.f32.mxu0 0.0
        %336 = vmatmul.mubr.f32.gmra.mrb[0].mxu0 %v210
        %v337 = vpop.f32.mrb[0].mxu0
        %v338 = vadd.f32 0.0, %v337
        %v339 = vpop.f32.mrb[0].mxu0
        %340 = vmatprep.mubr.f32.mxu0 0.0
        %341 = vmatmul.mubr.f32.gmra.mrb[0].mxu0 %v213
        %v342 = vpop.f32.mrb[0].mxu0
        %v343 = vadd.f32 0.0, %v342
        %v344 = vpop.f32.mrb[0].mxu0
        %345 = vmatprep.mubr.f32.mxu0 0.0
        %346 = vmatmul.mubr.f32.gmra.mrb[0].mxu0 %v216
        %v347 = vpop.f32.mrb[0].mxu0
        %v348 = vadd.f32 0.0, %v347
        %v349 = vpop.f32.mrb[0].mxu0
        %350 = vmatprep.mubr.f32.mxu0 0.0
        %351 = vmatmul.mubr.f32.gmra.mrb[0].mxu0 %v219
        %v352 = vpop.f32.mrb[0].mxu0
        %v353 = vadd.f32 0.0, %v352
        %v354 = vpop.f32.mrb[0].mxu0
        %355 = vmatprep.mubr.f32.mxu0 0.0
        %356 = vmatmul.mubr.f32.gmra.mrb[0].mxu0 %v222
        %v357 = vpop.f32.mrb[0].mxu0
        %v358 = vadd.f32 0.0, %v357
        %v359 = vpop.f32.mrb[0].mxu0
        %360 = vmatprep.mubr.f32.mxu0 0.0
        %361 = vmatmul.mubr.f32.gmra.mrb[0].mxu0 %v225
        %v362 = vpop.f32.mrb[0].mxu0
        %v363 = vadd.f32 0.0, %v362
        %v364 = vpop.f32.mrb[0].mxu0
        %365 = vmatprep.mubr.f32.mxu0 0.0
        %366 = vmatmul.mubr.f32.gmra.mrb[0].mxu0 %v228
        %v367 = vpop.f32.mrb[0].mxu0
        %v368 = vadd.f32 0.0, %v367
        %v369 = vpop.f32.mrb[0].mxu0
        %370 = vmatprep.mubr.f32.mxu0 0.0
        %371 = vmatmul.mubr.f32.gmra.mrb[0].mxu0 %v231
        %v372 = vpop.f32.mrb[0].mxu0
        %v373 = vadd.f32 0.0, %v372
        %v374 = vpop.f32.mrb[0].mxu0
        %375 = vmatprep.mubr.f32.mxu0 0.0
        %376 = vmatmul.mubr.f32.gmra.mrb[0].mxu0 %v234
        %v377 = vpop.f32.mrb[0].mxu0
        %v378 = vadd.f32 0.0, %v377
        %v379 = vpop.f32.mrb[0].mxu0
        %380 = vdwg.mxu0
        %381 = vst [vmem:[#allocation2] sm:$0xff] %v303
        %382 = vst [vmem:[#allocation2 + $0x8] sm:$0xff] %v308
        %383 = vst [vmem:[#allocation2 + $0x10] sm:$0xff] %v313
        %384 = vst [vmem:[#allocation2 + $0x18] sm:$0xff] %v318
        %385 = vst [vmem:[#allocation2 + $0x20] sm:$0xff] %v323
        %386 = vst [vmem:[#allocation2 + $0x28] sm:$0xff] %v328
        %387 = vst [vmem:[#allocation2 + $0x30] sm:$0xff] %v333
        %388 = vst [vmem:[#allocation2 + $0x38] sm:$0xff] %v338
        %389 = vst [vmem:[#allocation2 + $0x40] sm:$0xff] %v343
        %390 = vst [vmem:[#allocation2 + $0x48] sm:$0xff] %v348
        %391 = vst [vmem:[#allocation2 + $0x50] sm:$0xff] %v353
        %392 = vst [vmem:[#allocation2 + $0x58] sm:$0xff] %v358
        %393 = vst [vmem:[#allocation2 + $0x60] sm:$0xff] %v363
        %394 = vst [vmem:[#allocation2 + $0x68] sm:$0xff] %v368
        %395 = vst [vmem:[#allocation2 + $0x70] sm:$0xff] %v373
        %396 = vst [vmem:[#allocation2 + $0x78] sm:$0xff] %v378
        %s397 = scalar_lea.vmem %s1, 16
        %v398 = vld [vmem:[%s397] sm:$0xff]
        %v399 = vld [vmem:[%s397 + $0x8] sm:$0xff]
        %400 = vmatprep.subr.mxu0 0.0
        %401 = vmatpush1.msra.mxu0 %v398
        %402 = vmatprep.subr.mxu0 0.0
        %403 = vmatpush1.msra.mxu0 %v399
        %404 = vmatprep.subr.mxu0 0.0
        %405 = vmatpush1.msra.mxu0 0.0
        %406 = vmatprep.subr.mxu0 0.0
        %407 = vmatpush1.msra.mxu0 0.0
        %408 = vmatprep.subr.mxu0 0.0
        %409 = vmatpush1.msra.mxu0 0.0
        %410 = vmatprep.subr.mxu0 0.0
        %411 = vmatpush1.msra.mxu0 0.0
        %412 = vmatprep.subr.mxu0 0.0
        %413 = vmatpush1.msra.mxu0 0.0
        %414 = vmatprep.subr.mxu0 0.0
        %415 = vmatpush1.msra.mxu0 0.0
        %416 = vmatprep.subr.mxu0 0.0
        %417 = vmatpush1.msra.mxu0 0.0
        %418 = vmatprep.subr.mxu0 0.0
        %419 = vmatpush1.msra.mxu0 0.0
        %420 = vmatprep.subr.mxu0 0.0
        %421 = vmatpush1.msra.mxu0 0.0
        %422 = vmatprep.subr.mxu0 0.0
        %423 = vmatpush1.msra.mxu0 0.0
        %424 = vmatprep.subr.mxu0 0.0
        %425 = vmatpush1.msra.mxu0 0.0
        %426 = vmatprep.subr.mxu0 0.0
        %427 = vmatpush1.msra.mxu0 0.0
        %428 = vmatprep.subr.mxu0 0.0
        %429 = vmatpush1.msra.mxu0 0.0
        %430 = vmatprep.subr.mxu0 0.0
        %431 = vmatpush1.msra.mxu0 0.0
        %432 = vmatprep.subr.mxu0 0.0
        %433 = vmatpush1.msra.mxu0 0.0
        %434 = vmatprep.subr.mxu0 0.0
        %435 = vmatpush1.msra.mxu0 0.0
        %436 = vmatprep.subr.mxu0 0.0
        %437 = vmatpush1.msra.mxu0 0.0
        %438 = vmatprep.subr.mxu0 0.0
        %439 = vmatpush1.msra.mxu0 0.0
        %440 = vmatprep.subr.mxu0 0.0
        %441 = vmatpush1.msra.mxu0 0.0
        %442 = vmatprep.subr.mxu0 0.0
        %443 = vmatpush1.msra.mxu0 0.0
        %444 = vmatprep.subr.mxu0 0.0
        %445 = vmatpush1.msra.mxu0 0.0
        %446 = vmatprep.subr.mxu0 0.0
        %447 = vmatpush1.msra.mxu0 0.0
        %448 = vmatprep.subr.mxu0 0.0
        %449 = vmatpush1.msra.mxu0 0.0
        %450 = vmatprep.subr.mxu0 0.0
        %451 = vmatpush1.msra.mxu0 0.0
        %452 = vmatprep.subr.mxu0 0.0
        %453 = vmatpush1.msra.mxu0 0.0
        %454 = vmatprep.subr.mxu0 0.0
        %455 = vmatpush1.msra.mxu0 0.0
        %456 = vmatprep.subr.mxu0 0.0
        %457 = vmatpush1.msra.mxu0 0.0
        %458 = vmatprep.subr.mxu0 0.0
        %459 = vmatpush1.msra.mxu0 0.0
        %460 = vmatprep.subr.mxu0 0.0
        %461 = vmatpush1.msra.mxu0 0.0
        %462 = vmatprep.subr.mxu0 0.0
        %463 = vmatpush1.msra.mxu0 0.0
        %464 = vmatprep.mubr.f32.mxu0 0.0
        %465 = vmatmul.mubr.f32.gmra.mrb[0].mxu0 %v189
        %v466 = vpop.f32.mrb[0].mxu0
        %v467 = vadd.f32 0.0, %v466
        %v468 = vpop.f32.mrb[0].mxu0
        %469 = vmatprep.mubr.f32.mxu0 0.0
        %470 = vmatmul.mubr.f32.gmra.mrb[0].mxu0 %v192
        %v471 = vpop.f32.mrb[0].mxu0
        %v472 = vadd.f32 0.0, %v471
        %v473 = vpop.f32.mrb[0].mxu0
        %474 = vmatprep.mubr.f32.mxu0 0.0
        %475 = vmatmul.mubr.f32.gmra.mrb[0].mxu0 %v195
        %v476 = vpop.f32.mrb[0].mxu0
        %v477 = vadd.f32 0.0, %v476
        %v478 = vpop.f32.mrb[0].mxu0
        %479 = vmatprep.mubr.f32.mxu0 0.0
        %480 = vmatmul.mubr.f32.gmra.mrb[0].mxu0 %v198
        %v481 = vpop.f32.mrb[0].mxu0
        %v482 = vadd.f32 0.0, %v481
        %v483 = vpop.f32.mrb[0].mxu0
        %484 = vmatprep.mubr.f32.mxu0 0.0
        %485 = vmatmul.mubr.f32.gmra.mrb[0].mxu0 %v201
        %v486 = vpop.f32.mrb[0].mxu0
        %v487 = vadd.f32 0.0, %v486
        %v488 = vpop.f32.mrb[0].mxu0
        %489 = vmatprep.mubr.f32.mxu0 0.0
        %490 = vmatmul.mubr.f32.gmra.mrb[0].mxu0 %v204
        %v491 = vpop.f32.mrb[0].mxu0
        %v492 = vadd.f32 0.0, %v491
        %v493 = vpop.f32.mrb[0].mxu0
        %494 = vmatprep.mubr.f32.mxu0 0.0
        %495 = vmatmul.mubr.f32.gmra.mrb[0].mxu0 %v207
        %v496 = vpop.f32.mrb[0].mxu0
        %v497 = vadd.f32 0.0, %v496
        %v498 = vpop.f32.mrb[0].mxu0
        %499 = vmatprep.mubr.f32.mxu0 0.0
        %500 = vmatmul.mubr.f32.gmra.mrb[0].mxu0 %v210
        %v501 = vpop.f32.mrb[0].mxu0
        %v502 = vadd.f32 0.0, %v501
        %v503 = vpop.f32.mrb[0].mxu0
        %504 = vmatprep.mubr.f32.mxu0 0.0
        %505 = vmatmul.mubr.f32.gmra.mrb[0].mxu0 %v213
        %v506 = vpop.f32.mrb[0].mxu0
        %v507 = vadd.f32 0.0, %v506
        %v508 = vpop.f32.mrb[0].mxu0
        %509 = vmatprep.mubr.f32.mxu0 0.0
        %510 = vmatmul.mubr.f32.gmra.mrb[0].mxu0 %v216
        %v511 = vpop.f32.mrb[0].mxu0
        %v512 = vadd.f32 0.0, %v511
        %v513 = vpop.f32.mrb[0].mxu0
        %514 = vmatprep.mubr.f32.mxu0 0.0
        %515 = vmatmul.mubr.f32.gmra.mrb[0].mxu0 %v219
        %v516 = vpop.f32.mrb[0].mxu0
        %v517 = vadd.f32 0.0, %v516
        %v518 = vpop.f32.mrb[0].mxu0
        %519 = vmatprep.mubr.f32.mxu0 0.0
        %520 = vmatmul.mubr.f32.gmra.mrb[0].mxu0 %v222
        %v521 = vpop.f32.mrb[0].mxu0
        %v522 = vadd.f32 0.0, %v521
        %v523 = vpop.f32.mrb[0].mxu0
        %524 = vmatprep.mubr.f32.mxu0 0.0
        %525 = vmatmul.mubr.f32.gmra.mrb[0].mxu0 %v225
        %v526 = vpop.f32.mrb[0].mxu0
        %v527 = vadd.f32 0.0, %v526
        %v528 = vpop.f32.mrb[0].mxu0
        %529 = vmatprep.mubr.f32.mxu0 0.0
        %530 = vmatmul.mubr.f32.gmra.mrb[0].mxu0 %v228
        %v531 = vpop.f32.mrb[0].mxu0
        %v532 = vadd.f32 0.0, %v531
        %v533 = vpop.f32.mrb[0].mxu0
        %534 = vmatprep.mubr.f32.mxu0 0.0
        %535 = vmatmul.mubr.f32.gmra.mrb[0].mxu0 %v231
        %v536 = vpop.f32.mrb[0].mxu0
        %v537 = vadd.f32 0.0, %v536
        %v538 = vpop.f32.mrb[0].mxu0
        %539 = vmatprep.mubr.f32.mxu0 0.0
        %540 = vmatmul.mubr.f32.gmra.mrb[0].mxu0 %v234
        %v541 = vpop.f32.mrb[0].mxu0
        %v542 = vadd.f32 0.0, %v541
        %v543 = vpop.f32.mrb[0].mxu0
        %544 = vdwg.mxu0
        %545 = vst [vmem:[#allocation2 + $0x80] sm:$0xff] %v467
        %546 = vst [vmem:[#allocation2 + $0x88] sm:$0xff] %v472
        %547 = vst [vmem:[#allocation2 + $0x90] sm:$0xff] %v477
        %548 = vst [vmem:[#allocation2 + $0x98] sm:$0xff] %v482
        %549 = vst [vmem:[#allocation2 + $0xa0] sm:$0xff] %v487
        %550 = vst [vmem:[#allocation2 + $0xa8] sm:$0xff] %v492
        %551 = vst [vmem:[#allocation2 + $0xb0] sm:$0xff] %v497
        %552 = vst [vmem:[#allocation2 + $0xb8] sm:$0xff] %v502
        %553 = vst [vmem:[#allocation2 + $0xc0] sm:$0xff] %v507
        %554 = vst [vmem:[#allocation2 + $0xc8] sm:$0xff] %v512
        %555 = vst [vmem:[#allocation2 + $0xd0] sm:$0xff] %v517
        %556 = vst [vmem:[#allocation2 + $0xd8] sm:$0xff] %v522
        %557 = vst [vmem:[#allocation2 + $0xe0] sm:$0xff] %v527
        %558 = vst [vmem:[#allocation2 + $0xe8] sm:$0xff] %v532
        %559 = vst [vmem:[#allocation2 + $0xf0] sm:$0xff] %v537
        %560 = vst [vmem:[#allocation2 + $0xf8] sm:$0xff] %v542
        %v561 = vlaneseq
        %v562 = vshrl.u32 %v561, 7
        %vm563 = vcmp.eq.s32.totalorder %v562, 0
        %v564 = vsel %vm563, 1.0, 0.0
        %565 = vst [vmem:[#allocation2 + $0x100] sm:$0xff] %v564
        %v566 = vld [vmem:[%s2] sm:$0xff]
        %v567 = vld [vmem:[%s2 + $0x8] sm:$0xff]
        %v568 = vld [vmem:[%s2 + $0x10] sm:$0xff]
        %v569 = vld [vmem:[%s2 + $0x18] sm:$0xff]
        %v570 = vld [vmem:[%s2 + $0x20] sm:$0xff]
        %v571 = vld [vmem:[%s2 + $0x28] sm:$0xff]
        %v572 = vld [vmem:[%s2 + $0x30] sm:$0xff]
        %v573 = vld [vmem:[%s2 + $0x38] sm:$0xff]
        %v574 = vld [vmem:[%s2 + $0x40] sm:$0xff]
        %v575 = vld [vmem:[%s2 + $0x48] sm:$0xff]
        %v576 = vld [vmem:[%s2 + $0x50] sm:$0xff]
        %v577 = vld [vmem:[%s2 + $0x58] sm:$0xff]
        %v578 = vld [vmem:[%s2 + $0x60] sm:$0xff]
        %v579 = vld [vmem:[%s2 + $0x68] sm:$0xff]
        %v580 = vld [vmem:[%s2 + $0x70] sm:$0xff]
        %v581 = vld [vmem:[%s2 + $0x78] sm:$0xff]
        %v582 = vld [vmem:[%s2 + $0x80] sm:$0xff]
        %v583 = vld [vmem:[%s2 + $0x88] sm:$0xff]
        %v584 = vld [vmem:[%s2 + $0x90] sm:$0xff]
        %v585 = vld [vmem:[%s2 + $0x98] sm:$0xff]
        %v586 = vld [vmem:[%s2 + $0xa0] sm:$0xff]
        %v587 = vld [vmem:[%s2 + $0xa8] sm:$0xff]
        %v588 = vld [vmem:[%s2 + $0xb0] sm:$0xff]
        %v589 = vld [vmem:[%s2 + $0xb8] sm:$0xff]
        %v590 = vld [vmem:[%s2 + $0xc0] sm:$0xff]
        %v591 = vld [vmem:[%s2 + $0xc8] sm:$0xff]
        %v592 = vld [vmem:[%s2 + $0xd0] sm:$0xff]
        %v593 = vld [vmem:[%s2 + $0xd8] sm:$0xff]
        %v594 = vld [vmem:[%s2 + $0xe0] sm:$0xff]
        %v595 = vld [vmem:[%s2 + $0xe8] sm:$0xff]
        %v596 = vld [vmem:[%s2 + $0xf0] sm:$0xff]
        %v597 = vld [vmem:[%s2 + $0xf8] sm:$0xff]
        %v598 = vld [vmem:[%s2 + $0x100] sm:$0xff]
        %v599 = vld [vmem:[%s2 + $0x108] sm:$0xff]
        %v600 = vld [vmem:[%s2 + $0x110] sm:$0xff]
        %v601 = vld [vmem:[%s2 + $0x118] sm:$0xff]
        %v602 = vld [vmem:[%s2 + $0x120] sm:$0xff]
        %v603 = vld [vmem:[%s2 + $0x128] sm:$0xff]
        %v604 = vld [vmem:[%s2 + $0x130] sm:$0xff]
        %v605 = vld [vmem:[%s2 + $0x138] sm:$0xff]
        %v606 = vld [vmem:[%s2 + $0x140] sm:$0xff]
        %v607 = vld [vmem:[%s2 + $0x148] sm:$0xff]
        %v608 = vld [vmem:[%s2 + $0x150] sm:$0xff]
        %v609 = vld [vmem:[%s2 + $0x158] sm:$0xff]
        %v610 = vld [vmem:[%s2 + $0x160] sm:$0xff]
        %v611 = vld [vmem:[%s2 + $0x168] sm:$0xff]
        %v612 = vld [vmem:[%s2 + $0x170] sm:$0xff]
        %v613 = vld [vmem:[%s2 + $0x178] sm:$0xff]
        %v614 = vld [vmem:[%s2 + $0x180] sm:$0xff]
        %v615 = vld [vmem:[%s2 + $0x188] sm:$0xff]
        %v616 = vld [vmem:[%s2 + $0x190] sm:$0xff]
        %v617 = vld [vmem:[%s2 + $0x198] sm:$0xff]
        %v618 = vld [vmem:[%s2 + $0x1a0] sm:$0xff]
        %v619 = vld [vmem:[%s2 + $0x1a8] sm:$0xff]
        %v620 = vld [vmem:[%s2 + $0x1b0] sm:$0xff]
        %v621 = vld [vmem:[%s2 + $0x1b8] sm:$0xff]
        %v622 = vld [vmem:[%s2 + $0x1c0] sm:$0xff]
        %v623 = vld [vmem:[%s2 + $0x1c8] sm:$0xff]
        %v624 = vld [vmem:[%s2 + $0x1d0] sm:$0xff]
        %v625 = vld [vmem:[%s2 + $0x1d8] sm:$0xff]
        %v626 = vld [vmem:[%s2 + $0x1e0] sm:$0xff]
        %v627 = vld [vmem:[%s2 + $0x1e8] sm:$0xff]
        %v628 = vld [vmem:[%s2 + $0x1f0] sm:$0xff]
        %v629 = vld [vmem:[%s2 + $0x1f8] sm:$0xff]
        %v630 = vld [vmem:[%s2 + $0x200] sm:$0xff]
        %v631 = vld [vmem:[%s2 + $0x208] sm:$0xff]
        %v632 = vld [vmem:[%s2 + $0x210] sm:$0xff]
        %v633 = vld [vmem:[%s2 + $0x218] sm:$0xff]
        %v634 = vld [vmem:[%s2 + $0x220] sm:$0xff]
        %v635 = vld [vmem:[%s2 + $0x228] sm:$0xff]
        %v636 = vld [vmem:[%s2 + $0x230] sm:$0xff]
        %v637 = vld [vmem:[%s2 + $0x238] sm:$0xff]
        %v638 = vld [vmem:[%s2 + $0x240] sm:$0xff]
        %v639 = vld [vmem:[%s2 + $0x248] sm:$0xff]
        %v640 = vld [vmem:[%s2 + $0x250] sm:$0xff]
        %v641 = vld [vmem:[%s2 + $0x258] sm:$0xff]
        %v642 = vld [vmem:[%s2 + $0x260] sm:$0xff]
        %v643 = vld [vmem:[%s2 + $0x268] sm:$0xff]
        %v644 = vld [vmem:[%s2 + $0x270] sm:$0xff]
        %v645 = vld [vmem:[%s2 + $0x278] sm:$0xff]
        %v646 = vld [vmem:[%s2 + $0x280] sm:$0xff]
        %v647 = vld [vmem:[%s2 + $0x288] sm:$0xff]
        %v648 = vld [vmem:[%s2 + $0x290] sm:$0xff]
        %v649 = vld [vmem:[%s2 + $0x298] sm:$0xff]
        %v650 = vld [vmem:[%s2 + $0x2a0] sm:$0xff]
        %v651 = vld [vmem:[%s2 + $0x2a8] sm:$0xff]
        %v652 = vld [vmem:[%s2 + $0x2b0] sm:$0xff]
        %v653 = vld [vmem:[%s2 + $0x2b8] sm:$0xff]
        %v654 = vld [vmem:[%s2 + $0x2c0] sm:$0xff]
        %v655 = vld [vmem:[%s2 + $0x2c8] sm:$0xff]
        %v656 = vld [vmem:[%s2 + $0x2d0] sm:$0xff]
        %v657 = vld [vmem:[%s2 + $0x2d8] sm:$0xff]
        %v658 = vld [vmem:[%s2 + $0x2e0] sm:$0xff]
        %v659 = vld [vmem:[%s2 + $0x2e8] sm:$0xff]
        %v660 = vld [vmem:[%s2 + $0x2f0] sm:$0xff]
        %v661 = vld [vmem:[%s2 + $0x2f8] sm:$0xff]
        %v662 = vld [vmem:[%s2 + $0x300] sm:$0xff]
        %v663 = vld [vmem:[%s2 + $0x308] sm:$0xff]
        %v664 = vld [vmem:[%s2 + $0x310] sm:$0xff]
        %v665 = vld [vmem:[%s2 + $0x318] sm:$0xff]
        %v666 = vld [vmem:[%s2 + $0x320] sm:$0xff]
        %v667 = vld [vmem:[%s2 + $0x328] sm:$0xff]
        %v668 = vld [vmem:[%s2 + $0x330] sm:$0xff]
        %v669 = vld [vmem:[%s2 + $0x338] sm:$0xff]
        %v670 = vld [vmem:[%s2 + $0x340] sm:$0xff]
        %v671 = vld [vmem:[#allocation2] sm:$0xff]
        %v672 = vld [vmem:[#allocation2 + $0x8] sm:$0xff]
        %v673 = vld [vmem:[#allocation2 + $0x10] sm:$0xff]
        %v674 = vld [vmem:[#allocation2 + $0x18] sm:$0xff]
        %v675 = vld [vmem:[#allocation2 + $0x20] sm:$0xff]
        %v676 = vld [vmem:[#allocation2 + $0x28] sm:$0xff]
        %v677 = vld [vmem:[#allocation2 + $0x30] sm:$0xff]
        %v678 = vld [vmem:[#allocation2 + $0x38] sm:$0xff]
        %v679 = vld [vmem:[#allocation2 + $0x40] sm:$0xff]
        %v680 = vld [vmem:[#allocation2 + $0x48] sm:$0xff]
        %v681 = vld [vmem:[#allocation2 + $0x50] sm:$0xff]
        %v682 = vld [vmem:[#allocation2 + $0x58] sm:$0xff]
        %v683 = vld [vmem:[#allocation2 + $0x60] sm:$0xff]
        %v684 = vld [vmem:[#allocation2 + $0x68] sm:$0xff]
        %v685 = vld [vmem:[#allocation2 + $0x70] sm:$0xff]
        %v686 = vld [vmem:[#allocation2 + $0x78] sm:$0xff]
        %v687 = vld [vmem:[#allocation2 + $0x80] sm:$0xff]
        %v688 = vld [vmem:[#allocation2 + $0x88] sm:$0xff]
        %v689 = vld [vmem:[#allocation2 + $0x90] sm:$0xff]
        %v690 = vld [vmem:[#allocation2 + $0x98] sm:$0xff]
        %v691 = vld [vmem:[#allocation2 + $0xa0] sm:$0xff]
        %v692 = vld [vmem:[#allocation2 + $0xa8] sm:$0xff]
        %v693 = vld [vmem:[#allocation2 + $0xb0] sm:$0xff]
        %v694 = vld [vmem:[#allocation2 + $0xb8] sm:$0xff]
        %v695 = vld [vmem:[#allocation2 + $0xc0] sm:$0xff]
        %v696 = vld [vmem:[#allocation2 + $0xc8] sm:$0xff]
        %v697 = vld [vmem:[#allocation2 + $0xd0] sm:$0xff]
        %v698 = vld [vmem:[#allocation2 + $0xd8] sm:$0xff]
        %v699 = vld [vmem:[#allocation2 + $0xe0] sm:$0xff]
        %v700 = vld [vmem:[#allocation2 + $0xe8] sm:$0xff]
        %v701 = vld [vmem:[#allocation2 + $0xf0] sm:$0xff]
        %v702 = vld [vmem:[#allocation2 + $0xf8] sm:$0xff]
        %v703 = vld [vmem:[#allocation2 + $0x100] sm:$0xff]
        %vm704 = vcmask 64512
        %v706 = vsel %vm704, %v568, 0
        %v709 = vsel %vm704, %v571, 0
        %v712 = vsel %vm704, %v574, 0
        %v715 = vsel %vm704, %v577, 0
        %v718 = vsel %vm704, %v580, 0
        %v721 = vsel %vm704, %v583, 0
        %v724 = vsel %vm704, %v586, 0
        %v727 = vsel %vm704, %v589, 0
        %v730 = vsel %vm704, %v592, 0
        %v733 = vsel %vm704, %v595, 0
        %v736 = vsel %vm704, %v598, 0
        %v739 = vsel %vm704, %v601, 0
        %v742 = vsel %vm704, %v604, 0
        %v745 = vsel %vm704, %v607, 0
        %v748 = vsel %vm704, %v610, 0
        %v751 = vsel %vm704, %v613, 0
        %v754 = vsel %vm704, %v616, 0
        %v757 = vsel %vm704, %v619, 0
        %v760 = vsel %vm704, %v622, 0
        %v763 = vsel %vm704, %v625, 0
        %v766 = vsel %vm704, %v628, 0
        %v769 = vsel %vm704, %v631, 0
        %v772 = vsel %vm704, %v634, 0
        %v775 = vsel %vm704, %v637, 0
        %v778 = vsel %vm704, %v640, 0
        %v781 = vsel %vm704, %v643, 0
        %v784 = vsel %vm704, %v646, 0
        %v787 = vsel %vm704, %v649, 0
        %v790 = vsel %vm704, %v652, 0
        %v793 = vsel %vm704, %v655, 0
        %v796 = vsel %vm704, %v658, 0
        %v799 = vsel %vm704, %v661, 0
        %v802 = vsel %vm704, %v664, 0
        %v805 = vsel %vm704, %v667, 0
        %v808 = vsel %vm704, %v670, 0
        %810 = vmatprep.subr.mxu0 0.0
        %811 = vmatpush1.msra.mxu0 %v671
        %812 = vmatprep.subr.mxu0 0.0
        %813 = vmatpush1.msra.mxu0 %v672
        %814 = vmatprep.subr.mxu0 0.0
        %815 = vmatpush1.msra.mxu0 %v673
        %816 = vmatprep.subr.mxu0 0.0
        %817 = vmatpush1.msra.mxu0 %v674
        %818 = vmatprep.subr.mxu0 0.0
        %819 = vmatpush1.msra.mxu0 %v675
        %820 = vmatprep.subr.mxu0 0.0
        %821 = vmatpush1.msra.mxu0 %v676
        %822 = vmatprep.subr.mxu0 0.0
        %823 = vmatpush1.msra.mxu0 %v677
        %824 = vmatprep.subr.mxu0 0.0
        %825 = vmatpush1.msra.mxu0 %v678
        %826 = vmatprep.subr.mxu0 0.0
        %827 = vmatpush1.msra.mxu0 %v679
        %828 = vmatprep.subr.mxu0 0.0
        %829 = vmatpush1.msra.mxu0 %v680
        %830 = vmatprep.subr.mxu0 0.0
        %831 = vmatpush1.msra.mxu0 %v681
        %832 = vmatprep.subr.mxu0 0.0
        %833 = vmatpush1.msra.mxu0 %v682
        %834 = vmatprep.subr.mxu0 0.0
        %835 = vmatpush1.msra.mxu0 %v683
        %836 = vmatprep.subr.mxu0 0.0
        %837 = vmatpush1.msra.mxu0 %v684
        %838 = vmatprep.subr.mxu0 0.0
        %839 = vmatpush1.msra.mxu0 %v685
        %840 = vmatprep.subr.mxu0 0.0
        %841 = vmatpush1.msra.mxu0 %v686
        %842 = vmatprep.subr.mxu0 0.0
        %843 = vmatpush1.msra.mxu0 %v687
        %844 = vmatprep.subr.mxu0 0.0
        %845 = vmatpush1.msra.mxu0 %v688
        %846 = vmatprep.subr.mxu0 0.0
        %847 = vmatpush1.msra.mxu0 %v689
        %848 = vmatprep.subr.mxu0 0.0
        %849 = vmatpush1.msra.mxu0 %v690
        %850 = vmatprep.subr.mxu0 0.0
        %851 = vmatpush1.msra.mxu0 %v691
        %852 = vmatprep.subr.mxu0 0.0
        %853 = vmatpush1.msra.mxu0 %v692
        %854 = vmatprep.subr.mxu0 0.0
        %855 = vmatpush1.msra.mxu0 %v693
        %856 = vmatprep.subr.mxu0 0.0
        %857 = vmatpush1.msra.mxu0 %v694
        %858 = vmatprep.subr.mxu0 0.0
        %859 = vmatpush1.msra.mxu0 %v695
        %860 = vmatprep.subr.mxu0 0.0
        %861 = vmatpush1.msra.mxu0 %v696
        %862 = vmatprep.subr.mxu0 0.0
        %863 = vmatpush1.msra.mxu0 %v697
        %864 = vmatprep.subr.mxu0 0.0
        %865 = vmatpush1.msra.mxu0 %v698
        %866 = vmatprep.subr.mxu0 0.0
        %867 = vmatpush1.msra.mxu0 %v699
        %868 = vmatprep.subr.mxu0 0.0
        %869 = vmatpush1.msra.mxu0 %v700
        %870 = vmatprep.subr.mxu0 0.0
        %871 = vmatpush1.msra.mxu0 %v701
        %872 = vmatprep.subr.mxu0 0.0
        %873 = vmatpush1.msra.mxu0 %v702
        %874 = vmatprep.mubr.f32.mxu0 %v567
        %875 = vmatmul.mubr.f32.gmra.mrb[0].mxu0 %v566
        %v876 = vpop.f32.mrb[0].mxu0
        %v877 = vadd.f32 0.0, %v876
        %v878 = vpop.f32.mrb[0].mxu0
        %879 = vmatprep.mubr.f32.mxu0 %v570
        %880 = vmatmul.mubr.f32.gmra.mrb[0].mxu0 %v569
        %v881 = vpop.f32.mrb[0].mxu0
        %v882 = vadd.f32 0.0, %v881
        %v883 = vpop.f32.mrb[0].mxu0
        %884 = vmatprep.mubr.f32.mxu0 %v573
        %885 = vmatmul.mubr.f32.gmra.mrb[0].mxu0 %v572
        %v886 = vpop.f32.mrb[0].mxu0
        %v887 = vadd.f32 0.0, %v886
        %v888 = vpop.f32.mrb[0].mxu0
        %889 = vmatprep.mubr.f32.mxu0 %v576
        %890 = vmatmul.mubr.f32.gmra.mrb[0].mxu0 %v575
        %v891 = vpop.f32.mrb[0].mxu0
        %v892 = vadd.f32 0.0, %v891
        %v893 = vpop.f32.mrb[0].mxu0
        %894 = vmatprep.mubr.f32.mxu0 %v579
        %895 = vmatmul.mubr.f32.gmra.mrb[0].mxu0 %v578
        %v896 = vpop.f32.mrb[0].mxu0
        %v897 = vadd.f32 0.0, %v896
        %v898 = vpop.f32.mrb[0].mxu0
        %899 = vmatprep.mubr.f32.mxu0 %v582
        %900 = vmatmul.mubr.f32.gmra.mrb[0].mxu0 %v581
        %v901 = vpop.f32.mrb[0].mxu0
        %v902 = vadd.f32 0.0, %v901
        %v903 = vpop.f32.mrb[0].mxu0
        %904 = vmatprep.mubr.f32.mxu0 %v585
        %905 = vmatmul.mubr.f32.gmra.mrb[0].mxu0 %v584
        %v906 = vpop.f32.mrb[0].mxu0
        %v907 = vadd.f32 0.0, %v906
        %v908 = vpop.f32.mrb[0].mxu0
        %909 = vmatprep.mubr.f32.mxu0 %v588
        %910 = vmatmul.mubr.f32.gmra.mrb[0].mxu0 %v587
        %v911 = vpop.f32.mrb[0].mxu0
        %v912 = vadd.f32 0.0, %v911
        %v913 = vpop.f32.mrb[0].mxu0
        %914 = vmatprep.mubr.f32.mxu0 %v591
        %915 = vmatmul.mubr.f32.gmra.mrb[0].mxu0 %v590
        %v916 = vpop.f32.mrb[0].mxu0
        %v917 = vadd.f32 0.0, %v916
        %v918 = vpop.f32.mrb[0].mxu0
        %919 = vmatprep.mubr.f32.mxu0 %v594
        %920 = vmatmul.mubr.f32.gmra.mrb[0].mxu0 %v593
        %v921 = vpop.f32.mrb[0].mxu0
        %v922 = vadd.f32 0.0, %v921
        %v923 = vpop.f32.mrb[0].mxu0
        %924 = vmatprep.mubr.f32.mxu0 %v597
        %925 = vmatmul.mubr.f32.gmra.mrb[0].mxu0 %v596
        %v926 = vpop.f32.mrb[0].mxu0
        %v927 = vadd.f32 0.0, %v926
        %v928 = vpop.f32.mrb[0].mxu0
        %929 = vmatprep.mubr.f32.mxu0 %v600
        %930 = vmatmul.mubr.f32.gmra.mrb[0].mxu0 %v599
        %v931 = vpop.f32.mrb[0].mxu0
        %v932 = vadd.f32 0.0, %v931
        %v933 = vpop.f32.mrb[0].mxu0
        %934 = vmatprep.mubr.f32.mxu0 %v603
        %935 = vmatmul.mubr.f32.gmra.mrb[0].mxu0 %v602
        %v936 = vpop.f32.mrb[0].mxu0
        %v937 = vadd.f32 0.0, %v936
        %v938 = vpop.f32.mrb[0].mxu0
        %939 = vmatprep.mubr.f32.mxu0 %v606
        %940 = vmatmul.mubr.f32.gmra.mrb[0].mxu0 %v605
        %v941 = vpop.f32.mrb[0].mxu0
        %v942 = vadd.f32 0.0, %v941
        %v943 = vpop.f32.mrb[0].mxu0
        %944 = vmatprep.mubr.f32.mxu0 %v609
        %945 = vmatmul.mubr.f32.gmra.mrb[0].mxu0 %v608
        %v946 = vpop.f32.mrb[0].mxu0
        %v947 = vadd.f32 0.0, %v946
        %v948 = vpop.f32.mrb[0].mxu0
        %949 = vmatprep.mubr.f32.mxu0 %v612
        %950 = vmatmul.mubr.f32.gmra.mrb[0].mxu0 %v611
        %v951 = vpop.f32.mrb[0].mxu0
        %v952 = vadd.f32 0.0, %v951
        %v953 = vpop.f32.mrb[0].mxu0
        %954 = vmatprep.mubr.f32.mxu0 %v615
        %955 = vmatmul.mubr.f32.gmra.mrb[0].mxu0 %v614
        %v956 = vpop.f32.mrb[0].mxu0
        %v957 = vadd.f32 0.0, %v956
        %v958 = vpop.f32.mrb[0].mxu0
        %959 = vmatprep.mubr.f32.mxu0 %v618
        %960 = vmatmul.mubr.f32.gmra.mrb[0].mxu0 %v617
        %v961 = vpop.f32.mrb[0].mxu0
        %v962 = vadd.f32 0.0, %v961
        %v963 = vpop.f32.mrb[0].mxu0
        %964 = vmatprep.mubr.f32.mxu0 %v621
        %965 = vmatmul.mubr.f32.gmra.mrb[0].mxu0 %v620
        %v966 = vpop.f32.mrb[0].mxu0
        %v967 = vadd.f32 0.0, %v966
        %v968 = vpop.f32.mrb[0].mxu0
        %969 = vmatprep.mubr.f32.mxu0 %v624
        %970 = vmatmul.mubr.f32.gmra.mrb[0].mxu0 %v623
        %v971 = vpop.f32.mrb[0].mxu0
        %v972 = vadd.f32 0.0, %v971
        %v973 = vpop.f32.mrb[0].mxu0
        %974 = vmatprep.mubr.f32.mxu0 %v627
        %975 = vmatmul.mubr.f32.gmra.mrb[0].mxu0 %v626
        %v976 = vpop.f32.mrb[0].mxu0
        %v977 = vadd.f32 0.0, %v976
        %v978 = vpop.f32.mrb[0].mxu0
        %979 = vmatprep.mubr.f32.mxu0 %v630
        %980 = vmatmul.mubr.f32.gmra.mrb[0].mxu0 %v629
        %v981 = vpop.f32.mrb[0].mxu0
        %v982 = vadd.f32 0.0, %v981
        %v983 = vpop.f32.mrb[0].mxu0
        %984 = vmatprep.mubr.f32.mxu0 %v633
        %985 = vmatmul.mubr.f32.gmra.mrb[0].mxu0 %v632
        %v986 = vpop.f32.mrb[0].mxu0
        %v987 = vadd.f32 0.0, %v986
        %v988 = vpop.f32.mrb[0].mxu0
        %989 = vmatprep.mubr.f32.mxu0 %v636
        %990 = vmatmul.mubr.f32.gmra.mrb[0].mxu0 %v635
        %v991 = vpop.f32.mrb[0].mxu0
        %v992 = vadd.f32 0.0, %v991
        %v993 = vpop.f32.mrb[0].mxu0
        %994 = vmatprep.mubr.f32.mxu0 %v639
        %995 = vmatmul.mubr.f32.gmra.mrb[0].mxu0 %v638
        %v996 = vpop.f32.mrb[0].mxu0
        %v997 = vadd.f32 0.0, %v996
        %v998 = vpop.f32.mrb[0].mxu0
        %999 = vmatprep.mubr.f32.mxu0 %v642
        %1000 = vmatmul.mubr.f32.gmra.mrb[0].mxu0 %v641
        %v1001 = vpop.f32.mrb[0].mxu0
        %v1002 = vadd.f32 0.0, %v1001
        %v1003 = vpop.f32.mrb[0].mxu0
        %1004 = vmatprep.mubr.f32.mxu0 %v645
        %1005 = vmatmul.mubr.f32.gmra.mrb[0].mxu0 %v644
        %v1006 = vpop.f32.mrb[0].mxu0
        %v1007 = vadd.f32 0.0, %v1006
        %v1008 = vpop.f32.mrb[0].mxu0
        %1009 = vmatprep.mubr.f32.mxu0 %v648
        %1010 = vmatmul.mubr.f32.gmra.mrb[0].mxu0 %v647
        %v1011 = vpop.f32.mrb[0].mxu0
        %v1012 = vadd.f32 0.0, %v1011
        %v1013 = vpop.f32.mrb[0].mxu0
        %1014 = vmatprep.mubr.f32.mxu0 %v651
        %1015 = vmatmul.mubr.f32.gmra.mrb[0].mxu0 %v650
        %v1016 = vpop.f32.mrb[0].mxu0
        %v1017 = vadd.f32 0.0, %v1016
        %v1018 = vpop.f32.mrb[0].mxu0
        %1019 = vmatprep.mubr.f32.mxu0 %v654
        %1020 = vmatmul.mubr.f32.gmra.mrb[0].mxu0 %v653
        %v1021 = vpop.f32.mrb[0].mxu0
        %v1022 = vadd.f32 0.0, %v1021
        %v1023 = vpop.f32.mrb[0].mxu0
        %1024 = vmatprep.mubr.f32.mxu0 %v657
        %1025 = vmatmul.mubr.f32.gmra.mrb[0].mxu0 %v656
        %v1026 = vpop.f32.mrb[0].mxu0
        %v1027 = vadd.f32 0.0, %v1026
        %v1028 = vpop.f32.mrb[0].mxu0
        %1029 = vmatprep.mubr.f32.mxu0 %v660
        %1030 = vmatmul.mubr.f32.gmra.mrb[0].mxu0 %v659
        %v1031 = vpop.f32.mrb[0].mxu0
        %v1032 = vadd.f32 0.0, %v1031
        %v1033 = vpop.f32.mrb[0].mxu0
        %1034 = vmatprep.mubr.f32.mxu0 %v663
        %1035 = vmatmul.mubr.f32.gmra.mrb[0].mxu0 %v662
        %v1036 = vpop.f32.mrb[0].mxu0
        %v1037 = vadd.f32 0.0, %v1036
        %v1038 = vpop.f32.mrb[0].mxu0
        %1039 = vmatprep.mubr.f32.mxu0 %v666
        %1040 = vmatmul.mubr.f32.gmra.mrb[0].mxu0 %v665
        %v1041 = vpop.f32.mrb[0].mxu0
        %v1042 = vadd.f32 0.0, %v1041
        %v1043 = vpop.f32.mrb[0].mxu0
        %1044 = vmatprep.mubr.f32.mxu0 %v669
        %1045 = vmatmul.mubr.f32.gmra.mrb[0].mxu0 %v668
        %v1046 = vpop.f32.mrb[0].mxu0
        %v1047 = vadd.f32 0.0, %v1046
        %v1048 = vpop.f32.mrb[0].mxu0
        %1049 = vdwg.mxu0
        %1050 = vmatprep.subr.mxu0 0.0
        %1051 = vmatpush1.msra.mxu0 %v703
        %1052 = vmatprep.subr.mxu0 0.0
        %1053 = vmatpush1.msra.mxu0 0.0
        %1054 = vmatprep.subr.mxu0 0.0
        %1055 = vmatpush1.msra.mxu0 0.0
        %1056 = vmatprep.subr.mxu0 0.0
        %1057 = vmatpush1.msra.mxu0 0.0
        %1058 = vmatprep.subr.mxu0 0.0
        %1059 = vmatpush1.msra.mxu0 0.0
        %1060 = vmatprep.subr.mxu0 0.0
        %1061 = vmatpush1.msra.mxu0 0.0
        %1062 = vmatprep.subr.mxu0 0.0
        %1063 = vmatpush1.msra.mxu0 0.0
        %1064 = vmatprep.subr.mxu0 0.0
        %1065 = vmatpush1.msra.mxu0 0.0
        %1066 = vmatprep.subr.mxu0 0.0
        %1067 = vmatpush1.msra.mxu0 0.0
        %1068 = vmatprep.subr.mxu0 0.0
        %1069 = vmatpush1.msra.mxu0 0.0
        %1070 = vmatprep.subr.mxu0 0.0
        %1071 = vmatpush1.msra.mxu0 0.0
        %1072 = vmatprep.subr.mxu0 0.0
        %1073 = vmatpush1.msra.mxu0 0.0
        %1074 = vmatprep.subr.mxu0 0.0
        %1075 = vmatpush1.msra.mxu0 0.0
        %1076 = vmatprep.subr.mxu0 0.0
        %1077 = vmatpush1.msra.mxu0 0.0
        %1078 = vmatprep.subr.mxu0 0.0
        %1079 = vmatpush1.msra.mxu0 0.0
        %1080 = vmatprep.subr.mxu0 0.0
        %1081 = vmatpush1.msra.mxu0 0.0
        %1082 = vmatprep.subr.mxu0 0.0
        %1083 = vmatpush1.msra.mxu0 0.0
        %1084 = vmatprep.subr.mxu0 0.0
        %1085 = vmatpush1.msra.mxu0 0.0
        %1086 = vmatprep.subr.mxu0 0.0
        %1087 = vmatpush1.msra.mxu0 0.0
        %1088 = vmatprep.subr.mxu0 0.0
        %1089 = vmatpush1.msra.mxu0 0.0
        %1090 = vmatprep.subr.mxu0 0.0
        %1091 = vmatpush1.msra.mxu0 0.0
        %1092 = vmatprep.subr.mxu0 0.0
        %1093 = vmatpush1.msra.mxu0 0.0
        %1094 = vmatprep.subr.mxu0 0.0
        %1095 = vmatpush1.msra.mxu0 0.0
        %1096 = vmatprep.subr.mxu0 0.0
        %1097 = vmatpush1.msra.mxu0 0.0
        %1098 = vmatprep.subr.mxu0 0.0
        %1099 = vmatpush1.msra.mxu0 0.0
        %1100 = vmatprep.subr.mxu0 0.0
        %1101 = vmatpush1.msra.mxu0 0.0
        %1102 = vmatprep.subr.mxu0 0.0
        %1103 = vmatpush1.msra.mxu0 0.0
        %1104 = vmatprep.subr.mxu0 0.0
        %1105 = vmatpush1.msra.mxu0 0.0
        %1106 = vmatprep.subr.mxu0 0.0
        %1107 = vmatpush1.msra.mxu0 0.0
        %1108 = vmatprep.subr.mxu0 0.0
        %1109 = vmatpush1.msra.mxu0 0.0
        %1110 = vmatprep.subr.mxu0 0.0
        %1111 = vmatpush1.msra.mxu0 0.0
        %1112 = vmatprep.subr.mxu0 0.0
        %1113 = vmatpush1.msra.mxu0 0.0
        %1114 = vmatprep.mubr.f32.mxu0 0.0
        %1115 = vmatmul.mubr.f32.gmra.mrb[0].mxu0 %v706
        %v1116 = vpop.f32.mrb[0].mxu0
        %v1117 = vadd.f32 %v877, %v1116
        %v1118 = vpop.f32.mrb[0].mxu0
        %1119 = vmatprep.mubr.f32.mxu0 0.0
        %1120 = vmatmul.mubr.f32.gmra.mrb[0].mxu0 %v709
        %v1121 = vpop.f32.mrb[0].mxu0
        %v1122 = vadd.f32 %v882, %v1121
        %v1123 = vpop.f32.mrb[0].mxu0
        %1124 = vmatprep.mubr.f32.mxu0 0.0
        %1125 = vmatmul.mubr.f32.gmra.mrb[0].mxu0 %v712
        %v1126 = vpop.f32.mrb[0].mxu0
        %v1127 = vadd.f32 %v887, %v1126
        %v1128 = vpop.f32.mrb[0].mxu0
        %1129 = vmatprep.mubr.f32.mxu0 0.0
        %1130 = vmatmul.mubr.f32.gmra.mrb[0].mxu0 %v715
        %v1131 = vpop.f32.mrb[0].mxu0
        %v1132 = vadd.f32 %v892, %v1131
        %v1133 = vpop.f32.mrb[0].mxu0
        %1134 = vmatprep.mubr.f32.mxu0 0.0
        %1135 = vmatmul.mubr.f32.gmra.mrb[0].mxu0 %v718
        %v1136 = vpop.f32.mrb[0].mxu0
        %v1137 = vadd.f32 %v897, %v1136
        %v1138 = vpop.f32.mrb[0].mxu0
        %1139 = vmatprep.mubr.f32.mxu0 0.0
        %1140 = vmatmul.mubr.f32.gmra.mrb[0].mxu0 %v721
        %v1141 = vpop.f32.mrb[0].mxu0
        %v1142 = vadd.f32 %v902, %v1141
        %v1143 = vpop.f32.mrb[0].mxu0
        %1144 = vmatprep.mubr.f32.mxu0 0.0
        %1145 = vmatmul.mubr.f32.gmra.mrb[0].mxu0 %v724
        %v1146 = vpop.f32.mrb[0].mxu0
        %v1147 = vadd.f32 %v907, %v1146
        %v1148 = vpop.f32.mrb[0].mxu0
        %1149 = vmatprep.mubr.f32.mxu0 0.0
        %1150 = vmatmul.mubr.f32.gmra.mrb[0].mxu0 %v727
        %v1151 = vpop.f32.mrb[0].mxu0
        %v1152 = vadd.f32 %v912, %v1151
        %v1153 = vpop.f32.mrb[0].mxu0
        %1154 = vmatprep.mubr.f32.mxu0 0.0
        %1155 = vmatmul.mubr.f32.gmra.mrb[0].mxu0 %v730
        %v1156 = vpop.f32.mrb[0].mxu0
        %v1157 = vadd.f32 %v917, %v1156
        %v1158 = vpop.f32.mrb[0].mxu0
        %1159 = vmatprep.mubr.f32.mxu0 0.0
        %1160 = vmatmul.mubr.f32.gmra.mrb[0].mxu0 %v733
        %v1161 = vpop.f32.mrb[0].mxu0
        %v1162 = vadd.f32 %v922, %v1161
        %v1163 = vpop.f32.mrb[0].mxu0
        %1164 = vmatprep.mubr.f32.mxu0 0.0
        %1165 = vmatmul.mubr.f32.gmra.mrb[0].mxu0 %v736
        %v1166 = vpop.f32.mrb[0].mxu0
        %v1167 = vadd.f32 %v927, %v1166
        %v1168 = vpop.f32.mrb[0].mxu0
        %1169 = vmatprep.mubr.f32.mxu0 0.0
        %1170 = vmatmul.mubr.f32.gmra.mrb[0].mxu0 %v739
        %v1171 = vpop.f32.mrb[0].mxu0
        %v1172 = vadd.f32 %v932, %v1171
        %v1173 = vpop.f32.mrb[0].mxu0
        %1174 = vmatprep.mubr.f32.mxu0 0.0
        %1175 = vmatmul.mubr.f32.gmra.mrb[0].mxu0 %v742
        %v1176 = vpop.f32.mrb[0].mxu0
        %v1177 = vadd.f32 %v937, %v1176
        %v1178 = vpop.f32.mrb[0].mxu0
        %1179 = vmatprep.mubr.f32.mxu0 0.0
        %1180 = vmatmul.mubr.f32.gmra.mrb[0].mxu0 %v745
        %v1181 = vpop.f32.mrb[0].mxu0
        %v1182 = vadd.f32 %v942, %v1181
        %v1183 = vpop.f32.mrb[0].mxu0
        %1184 = vmatprep.mubr.f32.mxu0 0.0
        %1185 = vmatmul.mubr.f32.gmra.mrb[0].mxu0 %v748
        %v1186 = vpop.f32.mrb[0].mxu0
        %v1187 = vadd.f32 %v947, %v1186
        %v1188 = vpop.f32.mrb[0].mxu0
        %1189 = vmatprep.mubr.f32.mxu0 0.0
        %1190 = vmatmul.mubr.f32.gmra.mrb[0].mxu0 %v751
        %v1191 = vpop.f32.mrb[0].mxu0
        %v1192 = vadd.f32 %v952, %v1191
        %v1193 = vpop.f32.mrb[0].mxu0
        %1194 = vmatprep.mubr.f32.mxu0 0.0
        %1195 = vmatmul.mubr.f32.gmra.mrb[0].mxu0 %v754
        %v1196 = vpop.f32.mrb[0].mxu0
        %v1197 = vadd.f32 %v957, %v1196
        %v1198 = vpop.f32.mrb[0].mxu0
        %1199 = vmatprep.mubr.f32.mxu0 0.0
        %1200 = vmatmul.mubr.f32.gmra.mrb[0].mxu0 %v757
        %v1201 = vpop.f32.mrb[0].mxu0
        %v1202 = vadd.f32 %v962, %v1201
        %v1203 = vpop.f32.mrb[0].mxu0
        %1204 = vmatprep.mubr.f32.mxu0 0.0
        %1205 = vmatmul.mubr.f32.gmra.mrb[0].mxu0 %v760
        %v1206 = vpop.f32.mrb[0].mxu0
        %v1207 = vadd.f32 %v967, %v1206
        %v1208 = vpop.f32.mrb[0].mxu0
        %1209 = vmatprep.mubr.f32.mxu0 0.0
        %1210 = vmatmul.mubr.f32.gmra.mrb[0].mxu0 %v763
        %v1211 = vpop.f32.mrb[0].mxu0
        %v1212 = vadd.f32 %v972, %v1211
        %v1213 = vpop.f32.mrb[0].mxu0
        %1214 = vmatprep.mubr.f32.mxu0 0.0
        %1215 = vmatmul.mubr.f32.gmra.mrb[0].mxu0 %v766
        %v1216 = vpop.f32.mrb[0].mxu0
        %v1217 = vadd.f32 %v977, %v1216
        %v1218 = vpop.f32.mrb[0].mxu0
        %1219 = vmatprep.mubr.f32.mxu0 0.0
        %1220 = vmatmul.mubr.f32.gmra.mrb[0].mxu0 %v769
        %v1221 = vpop.f32.mrb[0].mxu0
        %v1222 = vadd.f32 %v982, %v1221
        %v1223 = vpop.f32.mrb[0].mxu0
        %1224 = vmatprep.mubr.f32.mxu0 0.0
        %1225 = vmatmul.mubr.f32.gmra.mrb[0].mxu0 %v772
        %v1226 = vpop.f32.mrb[0].mxu0
        %v1227 = vadd.f32 %v987, %v1226
        %v1228 = vpop.f32.mrb[0].mxu0
        %1229 = vmatprep.mubr.f32.mxu0 0.0
        %1230 = vmatmul.mubr.f32.gmra.mrb[0].mxu0 %v775
        %v1231 = vpop.f32.mrb[0].mxu0
        %v1232 = vadd.f32 %v992, %v1231
        %v1233 = vpop.f32.mrb[0].mxu0
        %1234 = vmatprep.mubr.f32.mxu0 0.0
        %1235 = vmatmul.mubr.f32.gmra.mrb[0].mxu0 %v778
        %v1236 = vpop.f32.mrb[0].mxu0
        %v1237 = vadd.f32 %v997, %v1236
        %v1238 = vpop.f32.mrb[0].mxu0
        %1239 = vmatprep.mubr.f32.mxu0 0.0
        %1240 = vmatmul.mubr.f32.gmra.mrb[0].mxu0 %v781
        %v1241 = vpop.f32.mrb[0].mxu0
        %v1242 = vadd.f32 %v1002, %v1241
        %v1243 = vpop.f32.mrb[0].mxu0
        %1244 = vmatprep.mubr.f32.mxu0 0.0
        %1245 = vmatmul.mubr.f32.gmra.mrb[0].mxu0 %v784
        %v1246 = vpop.f32.mrb[0].mxu0
        %v1247 = vadd.f32 %v1007, %v1246
        %v1248 = vpop.f32.mrb[0].mxu0
        %1249 = vmatprep.mubr.f32.mxu0 0.0
        %1250 = vmatmul.mubr.f32.gmra.mrb[0].mxu0 %v787
        %v1251 = vpop.f32.mrb[0].mxu0
        %v1252 = vadd.f32 %v1012, %v1251
        %v1253 = vpop.f32.mrb[0].mxu0
        %1254 = vmatprep.mubr.f32.mxu0 0.0
        %1255 = vmatmul.mubr.f32.gmra.mrb[0].mxu0 %v790
        %v1256 = vpop.f32.mrb[0].mxu0
        %v1257 = vadd.f32 %v1017, %v1256
        %v1258 = vpop.f32.mrb[0].mxu0
        %1259 = vmatprep.mubr.f32.mxu0 0.0
        %1260 = vmatmul.mubr.f32.gmra.mrb[0].mxu0 %v793
        %v1261 = vpop.f32.mrb[0].mxu0
        %v1262 = vadd.f32 %v1022, %v1261
        %v1263 = vpop.f32.mrb[0].mxu0
        %1264 = vmatprep.mubr.f32.mxu0 0.0
        %1265 = vmatmul.mubr.f32.gmra.mrb[0].mxu0 %v796
        %v1266 = vpop.f32.mrb[0].mxu0
        %v1267 = vadd.f32 %v1027, %v1266
        %v1268 = vpop.f32.mrb[0].mxu0
        %1269 = vmatprep.mubr.f32.mxu0 0.0
        %1270 = vmatmul.mubr.f32.gmra.mrb[0].mxu0 %v799
        %v1271 = vpop.f32.mrb[0].mxu0
        %v1272 = vadd.f32 %v1032, %v1271
        %v1273 = vpop.f32.mrb[0].mxu0
        %1274 = vmatprep.mubr.f32.mxu0 0.0
        %1275 = vmatmul.mubr.f32.gmra.mrb[0].mxu0 %v802
        %v1276 = vpop.f32.mrb[0].mxu0
        %v1277 = vadd.f32 %v1037, %v1276
        %v1278 = vpop.f32.mrb[0].mxu0
        %1279 = vmatprep.mubr.f32.mxu0 0.0
        %1280 = vmatmul.mubr.f32.gmra.mrb[0].mxu0 %v805
        %v1281 = vpop.f32.mrb[0].mxu0
        %v1282 = vadd.f32 %v1042, %v1281
        %v1283 = vpop.f32.mrb[0].mxu0
        %1284 = vmatprep.mubr.f32.mxu0 0.0
        %1285 = vmatmul.mubr.f32.gmra.mrb[0].mxu0 %v808
        %v1286 = vpop.f32.mrb[0].mxu0
        %v1287 = vadd.f32 %v1047, %v1286
        %v1288 = vpop.f32.mrb[0].mxu0
        %1289 = vdwg.mxu0
        %1290 = vst [vmem:[%s163] sm:$0xff] %v1117
        %1291 = vst [vmem:[%s163 + $0x8] sm:$0xff] %v1122
        %1292 = vst [vmem:[%s163 + $0x10] sm:$0xff] %v1127
        %1293 = vst [vmem:[%s163 + $0x18] sm:$0xff] %v1132
        %1294 = vst [vmem:[%s163 + $0x20] sm:$0xff] %v1137
        %1295 = vst [vmem:[%s163 + $0x28] sm:$0xff] %v1142
        %1296 = vst [vmem:[%s163 + $0x30] sm:$0xff] %v1147
        %1297 = vst [vmem:[%s163 + $0x38] sm:$0xff] %v1152
        %1298 = vst [vmem:[%s163 + $0x40] sm:$0xff] %v1157
        %1299 = vst [vmem:[%s163 + $0x48] sm:$0xff] %v1162
        %1300 = vst [vmem:[%s163 + $0x50] sm:$0xff] %v1167
        %1301 = vst [vmem:[%s163 + $0x58] sm:$0xff] %v1172
        %1302 = vst [vmem:[%s163 + $0x60] sm:$0xff] %v1177
        %1303 = vst [vmem:[%s163 + $0x68] sm:$0xff] %v1182
        %1304 = vst [vmem:[%s163 + $0x70] sm:$0xff] %v1187
        %1305 = vst [vmem:[%s163 + $0x78] sm:$0xff] %v1192
        %1306 = vst [vmem:[%s163 + $0x80] sm:$0xff] %v1197
        %1307 = vst [vmem:[%s163 + $0x88] sm:$0xff] %v1202
        %1308 = vst [vmem:[%s163 + $0x90] sm:$0xff] %v1207
        %1309 = vst [vmem:[%s163 + $0x98] sm:$0xff] %v1212
        %1310 = vst [vmem:[%s163 + $0xa0] sm:$0xff] %v1217
        %1311 = vst [vmem:[%s163 + $0xa8] sm:$0xff] %v1222
        %1312 = vst [vmem:[%s163 + $0xb0] sm:$0xff] %v1227
        %1313 = vst [vmem:[%s163 + $0xb8] sm:$0xff] %v1232
        %1314 = vst [vmem:[%s163 + $0xc0] sm:$0xff] %v1237
        %1315 = vst [vmem:[%s163 + $0xc8] sm:$0xff] %v1242
        %1316 = vst [vmem:[%s163 + $0xd0] sm:$0xff] %v1247
        %1317 = vst [vmem:[%s163 + $0xd8] sm:$0xff] %v1252
        %1318 = vst [vmem:[%s163 + $0xe0] sm:$0xff] %v1257
        %1319 = vst [vmem:[%s163 + $0xe8] sm:$0xff] %v1262
        %1320 = vst [vmem:[%s163 + $0xf0] sm:$0xff] %v1267
        %1321 = vst [vmem:[%s163 + $0xf8] sm:$0xff] %v1272
        %1322 = vst [vmem:[%s163 + $0x100] sm:$0xff] %v1277
        %1323 = vst [vmem:[%s163 + $0x108] sm:$0xff] %v1282
        %1324 = vst [vmem:[%s163 + $0x110] sm:$0xff] %v1287
        %s1325 = sand.u32 %s93, 1
        %s1326 = scalar_lea.sflag [#allocation4], %s1325
        %s1327 = sand.u32 %s93, 1
        %s1328 = smul.addr %s1327, 280
        %s1329 = scalar_lea.vmem [#allocation3], %s1328
        // Predicated region
        $region33: #{_deconv_call.1} parent=31 // pred_check
          %p1330 = pneg %p103
        $region34: #{_deconv_call.1} parent=31 // pred_check_branch
          %1332 = sbr.rel (%p1330) target = $region36
        $region35: #{_deconv_call.1} parent=31 // pred_region
          %s1334 = ssub.s32 4480, 4480
          %1335 = vsyncadd %s1326, %s1334
          %s1336 = smul.addr %s17, 35
          %s1337 = smul.addr %s1336, 128
          %s1338 = scalar_lea.hbm %s3, %s1337
          %s1339 = sshll.u32 %s1329, 4
          %s1340 = int_to_ptr.vmem [resolvable:$true] %s1339
          %1345 = dma.vmem_to_hbm [thread:$0]  %s1340, 4480, %s1338, %s1326, 128, 128, 8
        $region36: #{_deconv_call.1} parent=31 // pred_fallthru
          _
      $region32: #{_deconv_call.1} parent=5 // pred_fallthru
        _
      %p1346 = scmp.le.s32.totalorder 2, %s12
      // Predicated region
      $region37: #{_deconv_call.1} parent=5 // pred_check
        %p1347 = pneg %p1346
      $region38: #{_deconv_call.1} parent=5 // pred_check_branch
        %1349 = sbr.rel (%p1347) target = $region40
      $region39: #{_deconv_call.1} parent=5 // pred_region
        %s1350 = ssub.s32 %s12, 2
        // Predicated region
        $region41: #{_deconv_call.1} parent=39 // pred_check
          %p1351 = pneg %p109
        $region42: #{_deconv_call.1} parent=39 // pred_check_branch
          %1353 = sbr.rel (%p1351) target = $region44
        $region43: #{_deconv_call.1} parent=39 // pred_region
          %s1354 = sand.u32 %s94, 1
          %s1355 = scalar_lea.sflag [#allocation4], %s1354
          %s1356 = sand.u32 %s94, 1
          %s1357 = smul.addr %s1356, 280
          %s1358 = scalar_lea.vmem [#allocation3], %s1357
          %1359 = dma.done %s1355, 4480
        $region44: #{_deconv_call.1} parent=39 // pred_fallthru
          _
      $region40: #{_deconv_call.1} parent=5 // pred_fallthru
        _
    $region6: #{_deconv_call.1} parent=1 // loop_footer
      %s16 = sadd.s32 1, %s12
    $region7: #{_deconv_call.1} parent=1 // loop_footer_branch
      %11 = sbr.rel target = $region3
    $region8: #{_deconv_call.1} parent=1 // loop_exit
      _
    %1360 = vsyncpa [#allocation4], 1
    %s1361 = scalar_lea.sflag [#allocation4], 1
    %1362 = vsyncpa %s1361, 1

</llo_original>
